<compile_context>
chip_gen: v7x
topology: tpu7x:2x2x1
jax: 0.10.0
libtpu: 0.0.40
codegen_flags: <defaults>
</compile_context>

<pallas_src>
import jax
import jax.numpy as jnp
from jax import lax
from jax.experimental import pallas as pl
from jax.experimental.pallas import tpu as pltpu


def _round_up(x, m):
    return ((x + m - 1) // m) * m


# ---------------------------------------------------------------------------
# Kernel: one grid step == one chunk of TC GRU time steps.
# ---------------------------------------------------------------------------
def gru_chunk_kernel(x_ref,     # (TC, Hp)     gathered embeddings for this chunk
                     h0_ref,    # (1, Hp)      initial hidden (VMEM-resident)
                     wx_ref,    # (Hp, 3*Hp)   input->gate weights  [r | z | n]
                     wh_ref,    # (Hp, 3*Hp)   hidden->gate weights [r | z | n]
                     bx_ref,    # (1, 3*Hp)    input biases
                     bh_ref,    # (1, 3*Hp)    hidden biases
                     out_ref,   # (TC, Hp)     per-step hidden outputs
                     h_scr,     # VMEM (1, Hp) hidden carry across chunks
                     gi_scr):   # VMEM (TC, 3*Hp) hoisted input-side gates
    TC, Hp = x_ref.shape
    c = pl.program_id(0)

    @pl.when(c == 0)
    def _():
        h_scr[...] = h0_ref[...]

    # Hoisted input projection: all TC steps' x-side gate pre-activations in
    # ONE tall MXU matmul (TC rows fill sublanes) -- off the sequential path.
    gi_scr[...] = (jnp.dot(x_ref[...], wx_ref[...],
                           preferred_element_type=jnp.float32) + bx_ref[...])

    def step(i, h):
        # Recurrent half only: (1, Hp) @ (Hp, 3*Hp).
        gh = (jnp.dot(h, wh_ref[...], preferred_element_type=jnp.float32)
              + bh_ref[...])
        gi = gi_scr[pl.ds(i, 1), :]                            # (1, 3*Hp)
        # One EUP sigmoid over the contiguous [r | z] span, then aligned slices.
        rz = jax.nn.sigmoid(gi[:, :2 * Hp] + gh[:, :2 * Hp])
        r = rz[:, :Hp]
        z = rz[:, Hp:2 * Hp]
        n = jnp.tanh(gi[:, 2 * Hp:] + r * gh[:, 2 * Hp:])
        h_new = (1.0 - z) * n + z * h
        out_ref[pl.ds(i, 1), :] = h_new                        # 128-lane-dense
        return h_new

    # unroll=True: cross-step visibility for the LLO scheduler.
    h_scr[...] = lax.fori_loop(0, TC, step, h_scr[...], unroll=True)


def _gru_pallas(x_p, h0_p, wx, wh, bx, bh, tc):
    """x_p: (T_pad, Hp) embeddings; returns (T_pad, Hp) per-step hiddens."""
    T_pad, Hp = x_p.shape
    assert T_pad % tc == 0

    return pl.pallas_call(
        gru_chunk_kernel,
        out_shape=jax.ShapeDtypeStruct((T_pad, Hp), jnp.float32),
        grid_spec=pltpu.PrefetchScalarGridSpec(
            num_scalar_prefetch=0,
            grid=(T_pad // tc,),
            in_specs=[
                # Per-chunk embedding rows.
                pl.BlockSpec((tc, Hp), lambda c: (c, 0)),
                # Constant block index -> VMEM-resident across the sequence.
                pl.BlockSpec((1, Hp), lambda c: (0, 0)),
                pl.BlockSpec((Hp, 3 * Hp), lambda c: (0, 0)),
                pl.BlockSpec((Hp, 3 * Hp), lambda c: (0, 0)),
                pl.BlockSpec((1, 3 * Hp), lambda c: (0, 0)),
                pl.BlockSpec((1, 3 * Hp), lambda c: (0, 0)),
            ],
            out_specs=pl.BlockSpec((tc, Hp), lambda c: (c, 0)),
            scratch_shapes=[
                pltpu.VMEM((1, Hp), jnp.float32),        # hidden carry
                pltpu.VMEM((tc, 3 * Hp), jnp.float32),   # hoisted gi chunk
            ],
        ),
        compiler_params=pltpu.CompilerParams(
            # Time-chunk axis carries the hidden state -> sequential.
            dimension_semantics=("arbitrary",),
        ),
    )(x_p, h0_p, wx, wh, bx, bh)


# ---------------------------------------------------------------------------
# Parameter packing (torch layout -> lane-aligned kernel layout).
# ---------------------------------------------------------------------------
def pack_params(emb, w_ih, w_hh, b_ih, b_hh, time_chunk=8):
    """emb:(V,H); w_ih/w_hh:(3H,H); b_ih/b_hh:(3H,) in torch gate order [r|z|n]."""
    V, H = emb.shape
    Hp = max(128, _round_up(H, 128))

    emb_p = jnp.zeros((V, Hp), jnp.float32).at[:, :H].set(emb)

    def pack_w(w):
        # torch rows [W_r; W_z; W_n], each (H, H) -> columns [r | z | n], each
        # gate padded to its own 128-lane span.  Padded rows/cols are zero, so
        # padded lanes never leak into real lanes and padded hidden lanes stay 0.
        out = jnp.zeros((Hp, 3 * Hp), jnp.float32)
        for g in range(3):
            out = out.at[:H, g * Hp:g * Hp + H].set(w[g * H:(g + 1) * H].T)
        return out

    def pack_b(b):
        out = jnp.zeros((1, 3 * Hp), jnp.float32)
        for g in range(3):
            out = out.at[0, g * Hp:g * Hp + H].set(b[g * H:(g + 1) * H])
        return out

    return dict(emb=emb_p, wx=pack_w(w_ih), wh=pack_w(w_hh),
                bx=pack_b(b_ih), bh=pack_b(b_hh),
                H=H, Hp=Hp, V=V, TC=int(time_chunk))


# ---------------------------------------------------------------------------
# Python wrappers.
# ---------------------------------------------------------------------------
def encode_sequence(tokens, hidden, packed):
    """tokens:(T,) int32; hidden:(1,1,H) -> (outputs (T,1,1,H), final hidden (1,1,H))."""
    H, Hp, V, TC = packed["H"], packed["Hp"], packed["V"], packed["TC"]
    T = int(tokens.shape[0])
    T_pad = _round_up(max(T, 1), TC)

    tokens = jnp.clip(tokens.astype(jnp.int32), 0, V - 1)     # bounds-safe gather
    # Embedding gather done wrapper-side (a single tiny XLA gather), so the
    # kernel's input DMA is a dense (TC, Hp) slab instead of T row fetches.
    x_rows = jnp.take(packed["emb"], tokens, axis=0)          # (T, Hp)
    x_p = jnp.zeros((T_pad, Hp), jnp.float32).at[:T].set(x_rows)

    h0_p = jnp.zeros((1, Hp), jnp.float32).at[:, :H].set(hidden.reshape(1, H))

    out = _gru_pallas(x_p, h0_p, packed["wx"], packed["wh"],
                      packed["bx"], packed["bh"], TC)         # (T_pad, Hp)
    outs = out[:T, :H].reshape(T, 1, 1, H)
    return outs, outs[-1]


def encoder_rnn_forward(token_idx, hidden, packed):
    """Single-step forward matching EncoderRNN.forward: returns (output, hidden), each (1,1,H).

    NOTE: for multi-token sequences prefer encode_sequence (one pallas_call,
    weights DMA'd once); calling this per token relaunches the kernel.
    """
    outs, h_final = encode_sequence(jnp.reshape(token_idx, (1,)), hidden, packed)
    # output == hidden for a single-layer, single-step GRU; duplicated here.
    return outs[0], h_final


# ---------------------------------------------------------------------------
# Pure-JAX reference (same math as a torch.nn.GRU single step).
# ---------------------------------------------------------------------------
def reference_step(tok, hidden, emb, w_ih, w_hh, b_ih, b_hh):
    H = hidden.shape[-1]
    x = emb[tok][None, :]
    h = hidden.reshape(1, H)
    gi = x @ w_ih.T + b_ih[None, :]
    gh = h @ w_hh.T + b_hh[None, :]
    i_r, i_z, i_n = gi[:, :H], gi[:, H:2 * H], gi[:, 2 * H:]
    h_r, h_z, h_n = gh[:, :H], gh[:, H:2 * H], gh[:, 2 * H:]
    r = jax.nn.sigmoid(i_r + h_r)
    z = jax.nn.sigmoid(i_z + h_z)
    n = jnp.tanh(i_n + r * h_n)
    h_new = (1.0 - z) * n + z * h
    return h_new.reshape(1, 1, H)


if __name__ == "__main__":
    VOCAB = 16
    HIDDEN = 32     # small test size (module default 100 also works: Hp pads to 128)
    SEQ = 10        # not a multiple of the time chunk -> exercises the padded tail

    key = jax.random.PRNGKey(0)
    k_emb, k_wih, k_whh, k_bih, k_bhh, k_tok = jax.random.split(key, 6)
    bound = 1.0 / jnp.sqrt(jnp.float32(HIDDEN))
    emb = jax.random.normal(k_emb, (VOCAB, HIDDEN), jnp.float32)
    w_ih = jax.random.uniform(k_wih, (3 * HIDDEN, HIDDEN), jnp.float32, -bound, bound)
    w_hh = jax.random.uniform(k_whh, (3 * HIDDEN, HIDDEN), jnp.float32, -bound, bound)
    b_ih = jax.random.uniform(k_bih, (3 * HIDDEN,), jnp.float32, -bound, bound)
    b_hh = jax.random.uniform(k_bhh, (3 * HIDDEN,), jnp.float32, -bound, bound)

    packed = pack_params(emb, w_ih, w_hh, b_ih, b_hh, time_chunk=8)
    tokens = jax.random.randint(k_tok, (SEQ,), 0, VOCAB, dtype=jnp.int32)
    hidden0 = jnp.zeros((1, 1, HIDDEN), jnp.float32)     # EncoderRNN.initHidden()

    # --- single-step forward (exact PyTorch EncoderRNN.forward semantics) ---
    out1, h1 = encoder_rnn_forward(tokens[:1], hidden0, packed)
    out1 = jax.block_until_ready(out1)
    h1 = jax.block_until_ready(h1)
    ref1 = reference_step(int(tokens[0]), hidden0, emb, w_ih, w_hh, b_ih, b_hh)
    assert out1.shape == (1, 1, HIDDEN) and h1.shape == (1, 1, HIDDEN)
    assert jnp.allclose(out1, ref1, atol=1e-4, rtol=1e-4), "single-step output mismatch"
    assert jnp.allclose(h1, ref1, atol=1e-4, rtol=1e-4), "single-step hidden mismatch"

    # --- whole sequence in one kernel launch (amortized launch + weight DMA) ---
    outs, h_final = encode_sequence(tokens, hidden0, packed)
    outs = jax.block_until_ready(outs)
    h_final = jax.block_until_ready(h_final)
    h_ref = hidden0
    for t in range(SEQ):
        h_ref = reference_step(int(tokens[t]), h_ref, emb, w_ih, w_hh, b_ih, b_hh)
        assert jnp.allclose(outs[t], h_ref, atol=1e-4, rtol=1e-4), f"mismatch at step {t}"
    assert jnp.allclose(h_final, h_ref, atol=1e-4, rtol=1e-4), "final hidden mismatch"

    print("KERNEL_OK")
</pallas_src>

<mosaic_0001>
module attributes {stable_mosaic.version = 11 : i64} {
  func.func @gru_chunk_kernel(%arg0: i32, %arg1: memref<8x128xf32, #tpu.memory_space<vmem>>, %arg2: memref<1x128xf32, #tpu.memory_space<vmem>>, %arg3: memref<128x384xf32, #tpu.memory_space<vmem>>, %arg4: memref<128x384xf32, #tpu.memory_space<vmem>>, %arg5: memref<1x384xf32, #tpu.memory_space<vmem>>, %arg6: memref<1x384xf32, #tpu.memory_space<vmem>>, %arg7: memref<8x128xf32, #tpu.memory_space<vmem>>, %arg8: memref<1x128xf32, #tpu.memory_space<vmem>>, %arg9: memref<8x384xf32, #tpu.memory_space<vmem>>) attributes {dimension_semantics = [#tpu.dimension_semantics<arbitrary>], iteration_bounds = array<i64: 1>, scalar_prefetch = 0 : i64, scratch_operands = 2 : i64, tpu.core_type = #tpu.core_type<tc>, window_params = [{transform_indices = @transform_0, window_bounds = array<i64: 8, 128>}, {pipeline_mode = #tpu.pipeline_mode<synchronous>, transform_indices = @transform_1, window_bounds = array<i64: 1, 128>}, {pipeline_mode = #tpu.pipeline_mode<synchronous>, transform_indices = @transform_2, window_bounds = array<i64: 128, 384>}, {pipeline_mode = #tpu.pipeline_mode<synchronous>, transform_indices = @transform_3, window_bounds = array<i64: 128, 384>}, {pipeline_mode = #tpu.pipeline_mode<synchronous>, transform_indices = @transform_4, window_bounds = array<i64: 1, 384>}, {pipeline_mode = #tpu.pipeline_mode<synchronous>, transform_indices = @transform_5, window_bounds = array<i64: 1, 384>}, {transform_indices = @transform_6, window_bounds = array<i64: 8, 128>}]} {
    %c0_i32 = arith.constant 0 : i32
    %0 = arith.cmpi eq, %arg0, %c0_i32 : i32
    %1 = arith.extui %0 : i1 to i32
    %c0_i32_0 = arith.constant 0 : i32
    %2 = arith.cmpi ne, %1, %c0_i32_0 : i32
    scf.if %2 {
      %c0_85 = arith.constant 0 : index
      %c0_86 = arith.constant 0 : index
      %236 = vector.load %arg2[%c0_85, %c0_86] : memref<1x128xf32, #tpu.memory_space<vmem>>, vector<1x128xf32>
      %c0_87 = arith.constant 0 : index
      %c0_88 = arith.constant 0 : index
      %237 = vector.load %arg8[%c0_87, %c0_88] : memref<1x128xf32, #tpu.memory_space<vmem>>, vector<1x128xf32>
      tpu.vector_store %arg8[%c0_87, %c0_88], %236 {strides = array<i32>} : memref<1x128xf32, #tpu.memory_space<vmem>>, vector<1x128xf32>,
    } else {
    }
    %c0 = arith.constant 0 : index
    %c0_1 = arith.constant 0 : index
    %3 = vector.load %arg1[%c0, %c0_1] : memref<8x128xf32, #tpu.memory_space<vmem>>, vector<8x128xf32>
    %c0_2 = arith.constant 0 : index
    %c0_3 = arith.constant 0 : index
    %4 = vector.load %arg3[%c0_2, %c0_3] : memref<128x384xf32, #tpu.memory_space<vmem>>, vector<128x384xf32>
    %cst = arith.constant dense<0.000000e+00> : vector<8x384xf32>
    %5 = tpu.matmul %3, %4, %cst {dimension_numbers = #tpu.dot_dimension_numbers<[1], [0], [0], [1], [0, 0, 1, 1], [], []>} : vector<8x128xf32>, vector<128x384xf32>, vector<8x384xf32> -> vector<8x384xf32>
    %c0_4 = arith.constant 0 : index
    %c0_5 = arith.constant 0 : index
    %6 = vector.load %arg5[%c0_4, %c0_5] : memref<1x384xf32, #tpu.memory_space<vmem>>, vector<1x384xf32>
    %7 = vector.broadcast %6 : vector<1x384xf32> to vector<8x384xf32>
    %8 = arith.addf %5, %7 : vector<8x384xf32>
    %c0_6 = arith.constant 0 : index
    %c0_7 = arith.constant 0 : index
    %9 = vector.load %arg9[%c0_6, %c0_7] : memref<8x384xf32, #tpu.memory_space<vmem>>, vector<8x384xf32>
    tpu.vector_store %arg9[%c0_6, %c0_7], %8 {strides = array<i32>} : memref<8x384xf32, #tpu.memory_space<vmem>>, vector<8x384xf32>,
    %c0_8 = arith.constant 0 : index
    %c0_9 = arith.constant 0 : index
    %10 = vector.load %arg8[%c0_8, %c0_9] : memref<1x128xf32, #tpu.memory_space<vmem>>, vector<1x128xf32>
    %c0_i32_10 = arith.constant 0 : i32
    %c0_11 = arith.constant 0 : index
    %c0_12 = arith.constant 0 : index
    %11 = vector.load %arg4[%c0_11, %c0_12] : memref<128x384xf32, #tpu.memory_space<vmem>>, vector<128x384xf32>
    %cst_13 = arith.constant dense<0.000000e+00> : vector<1x384xf32>
    %12 = tpu.matmul %10, %11, %cst_13 {dimension_numbers = #tpu.dot_dimension_numbers<[1], [0], [0], [1], [0, 0, 1, 1], [], []>} : vector<1x128xf32>, vector<128x384xf32>, vector<1x384xf32> -> vector<1x384xf32>
    %c0_14 = arith.constant 0 : index
    %c0_15 = arith.constant 0 : index
    %13 = vector.load %arg6[%c0_14, %c0_15] : memref<1x384xf32, #tpu.memory_space<vmem>>, vector<1x384xf32>
    %14 = arith.addf %12, %13 : vector<1x384xf32>
    %15 = arith.index_cast %c0_i32_10 : i32 to index
    %c0_16 = arith.constant 0 : index
    %16 = vector.load %arg9[%15, %c0_16] : memref<8x384xf32, #tpu.memory_space<vmem>>, vector<1x384xf32>
    %17 = vector.extract_strided_slice %16 {offsets = [0, 0], sizes = [1, 256], strides = [1, 1]} : vector<1x384xf32> to vector<1x256xf32>
    %18 = vector.extract_strided_slice %14 {offsets = [0, 0], sizes = [1, 256], strides = [1, 1]} : vector<1x384xf32> to vector<1x256xf32>
    %19 = arith.addf %17, %18 : vector<1x256xf32>
    %20 = arith.negf %19 : vector<1x256xf32>
    %21 = math.exp %20 : vector<1x256xf32>
    %cst_17 = arith.constant 1.000000e+00 : f32
    %22 = vector.broadcast %cst_17 : f32 to vector<1x256xf32>
    %23 = arith.addf %22, %21 : vector<1x256xf32>
    %24 = arith.divf %22, %23 : vector<1x256xf32>
    %25 = vector.extract_strided_slice %24 {offsets = [0, 0], sizes = [1, 128], strides = [1, 1]} : vector<1x256xf32> to vector<1x128xf32>
    %26 = vector.extract_strided_slice %24 {offsets = [0, 128], sizes = [1, 128], strides = [1, 1]} : vector<1x256xf32> to vector<1x128xf32>
    %27 = vector.extract_strided_slice %16 {offsets = [0, 256], sizes = [1, 128], strides = [1, 1]} : vector<1x384xf32> to vector<1x128xf32>
    %28 = vector.extract_strided_slice %14 {offsets = [0, 256], sizes = [1, 128], strides = [1, 1]} : vector<1x384xf32> to vector<1x128xf32>
    %29 = arith.mulf %25, %28 : vector<1x128xf32>
    %30 = arith.addf %27, %29 : vector<1x128xf32>
    %31 = math.tanh %30 : vector<1x128xf32>
    %cst_18 = arith.constant 1.000000e+00 : f32
    %32 = vector.broadcast %cst_18 : f32 to vector<1x128xf32>
    %33 = arith.subf %32, %26 : vector<1x128xf32>
    %34 = arith.mulf %33, %31 : vector<1x128xf32>
    %35 = arith.mulf %26, %10 : vector<1x128xf32>
    %36 = arith.addf %34, %35 : vector<1x128xf32>
    %37 = arith.index_cast %c0_i32_10 : i32 to index
    %c0_19 = arith.constant 0 : index
    %38 = vector.load %arg7[%37, %c0_19] : memref<8x128xf32, #tpu.memory_space<vmem>>, vector<1x128xf32>
    tpu.vector_store %arg7[%37, %c0_19], %36 {strides = array<i32>} : memref<8x128xf32, #tpu.memory_space<vmem>>, vector<1x128xf32>,
    %c1_i32 = arith.constant 1 : i32
    %c0_20 = arith.constant 0 : index
    %c0_21 = arith.constant 0 : index
    %39 = vector.load %arg4[%c0_20, %c0_21] : memref<128x384xf32, #tpu.memory_space<vmem>>, vector<128x384xf32>
    %cst_22 = arith.constant dense<0.000000e+00> : vector<1x384xf32>
    %40 = tpu.matmul %36, %39, %cst_22 {dimension_numbers = #tpu.dot_dimension_numbers<[1], [0], [0], [1], [0, 0, 1, 1], [], []>} : vector<1x128xf32>, vector<128x384xf32>, vector<1x384xf32> -> vector<1x384xf32>
    %c0_23 = arith.constant 0 : index
    %c0_24 = arith.constant 0 : index
    %41 = vector.load %arg6[%c0_23, %c0_24] : memref<1x384xf32, #tpu.memory_space<vmem>>, vector<1x384xf32>
    %42 = arith.addf %40, %41 : vector<1x384xf32>
    %43 = arith.index_cast %c1_i32 : i32 to index
    %c0_25 = arith.constant 0 : index
    %44 = vector.load %arg9[%43, %c0_25] : memref<8x384xf32, #tpu.memory_space<vmem>>, vector<1x384xf32>
    %45 = vector.extract_strided_slice %44 {offsets = [0, 0], sizes = [1, 256], strides = [1, 1]} : vector<1x384xf32> to vector<1x256xf32>
    %46 = vector.extract_strided_slice %42 {offsets = [0, 0], sizes = [1, 256], strides = [1, 1]} : vector<1x384xf32> to vector<1x256xf32>
    %47 = arith.addf %45, %46 : vector<1x256xf32>
    %48 = arith.negf %47 : vector<1x256xf32>
    %49 = math.exp %48 : vector<1x256xf32>
    %cst_26 = arith.constant 1.000000e+00 : f32
    %50 = vector.broadcast %cst_26 : f32 to vector<1x256xf32>
    %51 = arith.addf %50, %49 : vector<1x256xf32>
    %52 = arith.divf %50, %51 : vector<1x256xf32>
    %53 = vector.extract_strided_slice %52 {offsets = [0, 0], sizes = [1, 128], strides = [1, 1]} : vector<1x256xf32> to vector<1x128xf32>
    %54 = vector.extract_strided_slice %52 {offsets = [0, 128], sizes = [1, 128], strides = [1, 1]} : vector<1x256xf32> to vector<1x128xf32>
    %55 = vector.extract_strided_slice %44 {offsets = [0, 256], sizes = [1, 128], strides = [1, 1]} : vector<1x384xf32> to vector<1x128xf32>
    %56 = vector.extract_strided_slice %42 {offsets = [0, 256], sizes = [1, 128], strides = [1, 1]} : vector<1x384xf32> to vector<1x128xf32>
    %57 = arith.mulf %53, %56 : vector<1x128xf32>
    %58 = arith.addf %55, %57 : vector<1x128xf32>
    %59 = math.tanh %58 : vector<1x128xf32>
    %cst_27 = arith.constant 1.000000e+00 : f32
    %60 = vector.broadcast %cst_27 : f32 to vector<1x128xf32>
    %61 = arith.subf %60, %54 : vector<1x128xf32>
    %62 = arith.mulf %61, %59 : vector<1x128xf32>
    %63 = arith.mulf %54, %36 : vector<1x128xf32>
    %64 = arith.addf %62, %63 : vector<1x128xf32>
    %65 = arith.index_cast %c1_i32 : i32 to index
    %c0_28 = arith.constant 0 : index
    %66 = vector.load %arg7[%65, %c0_28] : memref<8x128xf32, #tpu.memory_space<vmem>>, vector<1x128xf32>
    tpu.vector_store %arg7[%65, %c0_28], %64 {strides = array<i32>} : memref<8x128xf32, #tpu.memory_space<vmem>>, vector<1x128xf32>,
    %c2_i32 = arith.constant 2 : i32
    %c0_29 = arith.constant 0 : index
    %c0_30 = arith.constant 0 : index
    %67 = vector.load %arg4[%c0_29, %c0_30] : memref<128x384xf32, #tpu.memory_space<vmem>>, vector<128x384xf32>
    %cst_31 = arith.constant dense<0.000000e+00> : vector<1x384xf32>
    %68 = tpu.matmul %64, %67, %cst_31 {dimension_numbers = #tpu.dot_dimension_numbers<[1], [0], [0], [1], [0, 0, 1, 1], [], []>} : vector<1x128xf32>, vector<128x384xf32>, vector<1x384xf32> -> vector<1x384xf32>
    %c0_32 = arith.constant 0 : index
    %c0_33 = arith.constant 0 : index
    %69 = vector.load %arg6[%c0_32, %c0_33] : memref<1x384xf32, #tpu.memory_space<vmem>>, vector<1x384xf32>
    %70 = arith.addf %68, %69 : vector<1x384xf32>
    %71 = arith.index_cast %c2_i32 : i32 to index
    %c0_34 = arith.constant 0 : index
    %72 = vector.load %arg9[%71, %c0_34] : memref<8x384xf32, #tpu.memory_space<vmem>>, vector<1x384xf32>
    %73 = vector.extract_strided_slice %72 {offsets = [0, 0], sizes = [1, 256], strides = [1, 1]} : vector<1x384xf32> to vector<1x256xf32>
    %74 = vector.extract_strided_slice %70 {offsets = [0, 0], sizes = [1, 256], strides = [1, 1]} : vector<1x384xf32> to vector<1x256xf32>
    %75 = arith.addf %73, %74 : vector<1x256xf32>
    %76 = arith.negf %75 : vector<1x256xf32>
    %77 = math.exp %76 : vector<1x256xf32>
    %cst_35 = arith.constant 1.000000e+00 : f32
    %78 = vector.broadcast %cst_35 : f32 to vector<1x256xf32>
    %79 = arith.addf %78, %77 : vector<1x256xf32>
    %80 = arith.divf %78, %79 : vector<1x256xf32>
    %81 = vector.extract_strided_slice %80 {offsets = [0, 0], sizes = [1, 128], strides = [1, 1]} : vector<1x256xf32> to vector<1x128xf32>
    %82 = vector.extract_strided_slice %80 {offsets = [0, 128], sizes = [1, 128], strides = [1, 1]} : vector<1x256xf32> to vector<1x128xf32>
    %83 = vector.extract_strided_slice %72 {offsets = [0, 256], sizes = [1, 128], strides = [1, 1]} : vector<1x384xf32> to vector<1x128xf32>
    %84 = vector.extract_strided_slice %70 {offsets = [0, 256], sizes = [1, 128], strides = [1, 1]} : vector<1x384xf32> to vector<1x128xf32>
    %85 = arith.mulf %81, %84 : vector<1x128xf32>
    %86 = arith.addf %83, %85 : vector<1x128xf32>
    %87 = math.tanh %86 : vector<1x128xf32>
    %cst_36 = arith.constant 1.000000e+00 : f32
    %88 = vector.broadcast %cst_36 : f32 to vector<1x128xf32>
    %89 = arith.subf %88, %82 : vector<1x128xf32>
    %90 = arith.mulf %89, %87 : vector<1x128xf32>
    %91 = arith.mulf %82, %64 : vector<1x128xf32>
    %92 = arith.addf %90, %91 : vector<1x128xf32>
    %93 = arith.index_cast %c2_i32 : i32 to index
    %c0_37 = arith.constant 0 : index
    %94 = vector.load %arg7[%93, %c0_37] : memref<8x128xf32, #tpu.memory_space<vmem>>, vector<1x128xf32>
    tpu.vector_store %arg7[%93, %c0_37], %92 {strides = array<i32>} : memref<8x128xf32, #tpu.memory_space<vmem>>, vector<1x128xf32>,
    %c3_i32 = arith.constant 3 : i32
    %c0_38 = arith.constant 0 : index
    %c0_39 = arith.constant 0 : index
    %95 = vector.load %arg4[%c0_38, %c0_39] : memref<128x384xf32, #tpu.memory_space<vmem>>, vector<128x384xf32>
    %cst_40 = arith.constant dense<0.000000e+00> : vector<1x384xf32>
    %96 = tpu.matmul %92, %95, %cst_40 {dimension_numbers = #tpu.dot_dimension_numbers<[1], [0], [0], [1], [0, 0, 1, 1], [], []>} : vector<1x128xf32>, vector<128x384xf32>, vector<1x384xf32> -> vector<1x384xf32>
    %c0_41 = arith.constant 0 : index
    %c0_42 = arith.constant 0 : index
    %97 = vector.load %arg6[%c0_41, %c0_42] : memref<1x384xf32, #tpu.memory_space<vmem>>, vector<1x384xf32>
    %98 = arith.addf %96, %97 : vector<1x384xf32>
    %99 = arith.index_cast %c3_i32 : i32 to index
    %c0_43 = arith.constant 0 : index
    %100 = vector.load %arg9[%99, %c0_43] : memref<8x384xf32, #tpu.memory_space<vmem>>, vector<1x384xf32>
    %101 = vector.extract_strided_slice %100 {offsets = [0, 0], sizes = [1, 256], strides = [1, 1]} : vector<1x384xf32> to vector<1x256xf32>
    %102 = vector.extract_strided_slice %98 {offsets = [0, 0], sizes = [1, 256], strides = [1, 1]} : vector<1x384xf32> to vector<1x256xf32>
    %103 = arith.addf %101, %102 : vector<1x256xf32>
    %104 = arith.negf %103 : vector<1x256xf32>
    %105 = math.exp %104 : vector<1x256xf32>
    %cst_44 = arith.constant 1.000000e+00 : f32
    %106 = vector.broadcast %cst_44 : f32 to vector<1x256xf32>
    %107 = arith.addf %106, %105 : vector<1x256xf32>
    %108 = arith.divf %106, %107 : vector<1x256xf32>
    %109 = vector.extract_strided_slice %108 {offsets = [0, 0], sizes = [1, 128], strides = [1, 1]} : vector<1x256xf32> to vector<1x128xf32>
    %110 = vector.extract_strided_slice %108 {offsets = [0, 128], sizes = [1, 128], strides = [1, 1]} : vector<1x256xf32> to vector<1x128xf32>
    %111 = vector.extract_strided_slice %100 {offsets = [0, 256], sizes = [1, 128], strides = [1, 1]} : vector<1x384xf32> to vector<1x128xf32>
    %112 = vector.extract_strided_slice %98 {offsets = [0, 256], sizes = [1, 128], strides = [1, 1]} : vector<1x384xf32> to vector<1x128xf32>
    %113 = arith.mulf %109, %112 : vector<1x128xf32>
    %114 = arith.addf %111, %113 : vector<1x128xf32>
    %115 = math.tanh %114 : vector<1x128xf32>
    %cst_45 = arith.constant 1.000000e+00 : f32
    %116 = vector.broadcast %cst_45 : f32 to vector<1x128xf32>
    %117 = arith.subf %116, %110 : vector<1x128xf32>
    %118 = arith.mulf %117, %115 : vector<1x128xf32>
    %119 = arith.mulf %110, %92 : vector<1x128xf32>
    %120 = arith.addf %118, %119 : vector<1x128xf32>
    %121 = arith.index_cast %c3_i32 : i32 to index
    %c0_46 = arith.constant 0 : index
    %122 = vector.load %arg7[%121, %c0_46] : memref<8x128xf32, #tpu.memory_space<vmem>>, vector<1x128xf32>
    tpu.vector_store %arg7[%121, %c0_46], %120 {strides = array<i32>} : memref<8x128xf32, #tpu.memory_space<vmem>>, vector<1x128xf32>,
    %c4_i32 = arith.constant 4 : i32
    %c0_47 = arith.constant 0 : index
    %c0_48 = arith.constant 0 : index
    %123 = vector.load %arg4[%c0_47, %c0_48] : memref<128x384xf32, #tpu.memory_space<vmem>>, vector<128x384xf32>
    %cst_49 = arith.constant dense<0.000000e+00> : vector<1x384xf32>
    %124 = tpu.matmul %120, %123, %cst_49 {dimension_numbers = #tpu.dot_dimension_numbers<[1], [0], [0], [1], [0, 0, 1, 1], [], []>} : vector<1x128xf32>, vector<128x384xf32>, vector<1x384xf32> -> vector<1x384xf32>
    %c0_50 = arith.constant 0 : index
    %c0_51 = arith.constant 0 : index
    %125 = vector.load %arg6[%c0_50, %c0_51] : memref<1x384xf32, #tpu.memory_space<vmem>>, vector<1x384xf32>
    %126 = arith.addf %124, %125 : vector<1x384xf32>
    %127 = arith.index_cast %c4_i32 : i32 to index
    %c0_52 = arith.constant 0 : index
    %128 = vector.load %arg9[%127, %c0_52] : memref<8x384xf32, #tpu.memory_space<vmem>>, vector<1x384xf32>
    %129 = vector.extract_strided_slice %128 {offsets = [0, 0], sizes = [1, 256], strides = [1, 1]} : vector<1x384xf32> to vector<1x256xf32>
    %130 = vector.extract_strided_slice %126 {offsets = [0, 0], sizes = [1, 256], strides = [1, 1]} : vector<1x384xf32> to vector<1x256xf32>
    %131 = arith.addf %129, %130 : vector<1x256xf32>
    %132 = arith.negf %131 : vector<1x256xf32>
    %133 = math.exp %132 : vector<1x256xf32>
    %cst_53 = arith.constant 1.000000e+00 : f32
    %134 = vector.broadcast %cst_53 : f32 to vector<1x256xf32>
    %135 = arith.addf %134, %133 : vector<1x256xf32>
    %136 = arith.divf %134, %135 : vector<1x256xf32>
    %137 = vector.extract_strided_slice %136 {offsets = [0, 0], sizes = [1, 128], strides = [1, 1]} : vector<1x256xf32> to vector<1x128xf32>
    %138 = vector.extract_strided_slice %136 {offsets = [0, 128], sizes = [1, 128], strides = [1, 1]} : vector<1x256xf32> to vector<1x128xf32>
    %139 = vector.extract_strided_slice %128 {offsets = [0, 256], sizes = [1, 128], strides = [1, 1]} : vector<1x384xf32> to vector<1x128xf32>
    %140 = vector.extract_strided_slice %126 {offsets = [0, 256], sizes = [1, 128], strides = [1, 1]} : vector<1x384xf32> to vector<1x128xf32>
    %141 = arith.mulf %137, %140 : vector<1x128xf32>
    %142 = arith.addf %139, %141 : vector<1x128xf32>
    %143 = math.tanh %142 : vector<1x128xf32>
    %cst_54 = arith.constant 1.000000e+00 : f32
    %144 = vector.broadcast %cst_54 : f32 to vector<1x128xf32>
    %145 = arith.subf %144, %138 : vector<1x128xf32>
    %146 = arith.mulf %145, %143 : vector<1x128xf32>
    %147 = arith.mulf %138, %120 : vector<1x128xf32>
    %148 = arith.addf %146, %147 : vector<1x128xf32>
    %149 = arith.index_cast %c4_i32 : i32 to index
    %c0_55 = arith.constant 0 : index
    %150 = vector.load %arg7[%149, %c0_55] : memref<8x128xf32, #tpu.memory_space<vmem>>, vector<1x128xf32>
    tpu.vector_store %arg7[%149, %c0_55], %148 {strides = array<i32>} : memref<8x128xf32, #tpu.memory_space<vmem>>, vector<1x128xf32>,
    %c5_i32 = arith.constant 5 : i32
    %c0_56 = arith.constant 0 : index
    %c0_57 = arith.constant 0 : index
    %151 = vector.load %arg4[%c0_56, %c0_57] : memref<128x384xf32, #tpu.memory_space<vmem>>, vector<128x384xf32>
    %cst_58 = arith.constant dense<0.000000e+00> : vector<1x384xf32>
    %152 = tpu.matmul %148, %151, %cst_58 {dimension_numbers = #tpu.dot_dimension_numbers<[1], [0], [0], [1], [0, 0, 1, 1], [], []>} : vector<1x128xf32>, vector<128x384xf32>, vector<1x384xf32> -> vector<1x384xf32>
    %c0_59 = arith.constant 0 : index
    %c0_60 = arith.constant 0 : index
    %153 = vector.load %arg6[%c0_59, %c0_60] : memref<1x384xf32, #tpu.memory_space<vmem>>, vector<1x384xf32>
    %154 = arith.addf %152, %153 : vector<1x384xf32>
    %155 = arith.index_cast %c5_i32 : i32 to index
    %c0_61 = arith.constant 0 : index
    %156 = vector.load %arg9[%155, %c0_61] : memref<8x384xf32, #tpu.memory_space<vmem>>, vector<1x384xf32>
    %157 = vector.extract_strided_slice %156 {offsets = [0, 0], sizes = [1, 256], strides = [1, 1]} : vector<1x384xf32> to vector<1x256xf32>
    %158 = vector.extract_strided_slice %154 {offsets = [0, 0], sizes = [1, 256], strides = [1, 1]} : vector<1x384xf32> to vector<1x256xf32>
    %159 = arith.addf %157, %158 : vector<1x256xf32>
    %160 = arith.negf %159 : vector<1x256xf32>
    %161 = math.exp %160 : vector<1x256xf32>
    %cst_62 = arith.constant 1.000000e+00 : f32
    %162 = vector.broadcast %cst_62 : f32 to vector<1x256xf32>
    %163 = arith.addf %162, %161 : vector<1x256xf32>
    %164 = arith.divf %162, %163 : vector<1x256xf32>
    %165 = vector.extract_strided_slice %164 {offsets = [0, 0], sizes = [1, 128], strides = [1, 1]} : vector<1x256xf32> to vector<1x128xf32>
    %166 = vector.extract_strided_slice %164 {offsets = [0, 128], sizes = [1, 128], strides = [1, 1]} : vector<1x256xf32> to vector<1x128xf32>
    %167 = vector.extract_strided_slice %156 {offsets = [0, 256], sizes = [1, 128], strides = [1, 1]} : vector<1x384xf32> to vector<1x128xf32>
    %168 = vector.extract_strided_slice %154 {offsets = [0, 256], sizes = [1, 128], strides = [1, 1]} : vector<1x384xf32> to vector<1x128xf32>
    %169 = arith.mulf %165, %168 : vector<1x128xf32>
    %170 = arith.addf %167, %169 : vector<1x128xf32>
    %171 = math.tanh %170 : vector<1x128xf32>
    %cst_63 = arith.constant 1.000000e+00 : f32
    %172 = vector.broadcast %cst_63 : f32 to vector<1x128xf32>
    %173 = arith.subf %172, %166 : vector<1x128xf32>
    %174 = arith.mulf %173, %171 : vector<1x128xf32>
    %175 = arith.mulf %166, %148 : vector<1x128xf32>
    %176 = arith.addf %174, %175 : vector<1x128xf32>
    %177 = arith.index_cast %c5_i32 : i32 to index
    %c0_64 = arith.constant 0 : index
    %178 = vector.load %arg7[%177, %c0_64] : memref<8x128xf32, #tpu.memory_space<vmem>>, vector<1x128xf32>
    tpu.vector_store %arg7[%177, %c0_64], %176 {strides = array<i32>} : memref<8x128xf32, #tpu.memory_space<vmem>>, vector<1x128xf32>,
    %c6_i32 = arith.constant 6 : i32
    %c0_65 = arith.constant 0 : index
    %c0_66 = arith.constant 0 : index
    %179 = vector.load %arg4[%c0_65, %c0_66] : memref<128x384xf32, #tpu.memory_space<vmem>>, vector<128x384xf32>
    %cst_67 = arith.constant dense<0.000000e+00> : vector<1x384xf32>
    %180 = tpu.matmul %176, %179, %cst_67 {dimension_numbers = #tpu.dot_dimension_numbers<[1], [0], [0], [1], [0, 0, 1, 1], [], []>} : vector<1x128xf32>, vector<128x384xf32>, vector<1x384xf32> -> vector<1x384xf32>
    %c0_68 = arith.constant 0 : index
    %c0_69 = arith.constant 0 : index
    %181 = vector.load %arg6[%c0_68, %c0_69] : memref<1x384xf32, #tpu.memory_space<vmem>>, vector<1x384xf32>
    %182 = arith.addf %180, %181 : vector<1x384xf32>
    %183 = arith.index_cast %c6_i32 : i32 to index
    %c0_70 = arith.constant 0 : index
    %184 = vector.load %arg9[%183, %c0_70] : memref<8x384xf32, #tpu.memory_space<vmem>>, vector<1x384xf32>
    %185 = vector.extract_strided_slice %184 {offsets = [0, 0], sizes = [1, 256], strides = [1, 1]} : vector<1x384xf32> to vector<1x256xf32>
    %186 = vector.extract_strided_slice %182 {offsets = [0, 0], sizes = [1, 256], strides = [1, 1]} : vector<1x384xf32> to vector<1x256xf32>
    %187 = arith.addf %185, %186 : vector<1x256xf32>
    %188 = arith.negf %187 : vector<1x256xf32>
    %189 = math.exp %188 : vector<1x256xf32>
    %cst_71 = arith.constant 1.000000e+00 : f32
    %190 = vector.broadcast %cst_71 : f32 to vector<1x256xf32>
    %191 = arith.addf %190, %189 : vector<1x256xf32>
    %192 = arith.divf %190, %191 : vector<1x256xf32>
    %193 = vector.extract_strided_slice %192 {offsets = [0, 0], sizes = [1, 128], strides = [1, 1]} : vector<1x256xf32> to vector<1x128xf32>
    %194 = vector.extract_strided_slice %192 {offsets = [0, 128], sizes = [1, 128], strides = [1, 1]} : vector<1x256xf32> to vector<1x128xf32>
    %195 = vector.extract_strided_slice %184 {offsets = [0, 256], sizes = [1, 128], strides = [1, 1]} : vector<1x384xf32> to vector<1x128xf32>
    %196 = vector.extract_strided_slice %182 {offsets = [0, 256], sizes = [1, 128], strides = [1, 1]} : vector<1x384xf32> to vector<1x128xf32>
    %197 = arith.mulf %193, %196 : vector<1x128xf32>
    %198 = arith.addf %195, %197 : vector<1x128xf32>
    %199 = math.tanh %198 : vector<1x128xf32>
    %cst_72 = arith.constant 1.000000e+00 : f32
    %200 = vector.broadcast %cst_72 : f32 to vector<1x128xf32>
    %201 = arith.subf %200, %194 : vector<1x128xf32>
    %202 = arith.mulf %201, %199 : vector<1x128xf32>
    %203 = arith.mulf %194, %176 : vector<1x128xf32>
    %204 = arith.addf %202, %203 : vector<1x128xf32>
    %205 = arith.index_cast %c6_i32 : i32 to index
    %c0_73 = arith.constant 0 : index
    %206 = vector.load %arg7[%205, %c0_73] : memref<8x128xf32, #tpu.memory_space<vmem>>, vector<1x128xf32>
    tpu.vector_store %arg7[%205, %c0_73], %204 {strides = array<i32>} : memref<8x128xf32, #tpu.memory_space<vmem>>, vector<1x128xf32>,
    %c7_i32 = arith.constant 7 : i32
    %c0_74 = arith.constant 0 : index
    %c0_75 = arith.constant 0 : index
    %207 = vector.load %arg4[%c0_74, %c0_75] : memref<128x384xf32, #tpu.memory_space<vmem>>, vector<128x384xf32>
    %cst_76 = arith.constant dense<0.000000e+00> : vector<1x384xf32>
    %208 = tpu.matmul %204, %207, %cst_76 {dimension_numbers = #tpu.dot_dimension_numbers<[1], [0], [0], [1], [0, 0, 1, 1], [], []>} : vector<1x128xf32>, vector<128x384xf32>, vector<1x384xf32> -> vector<1x384xf32>
    %c0_77 = arith.constant 0 : index
    %c0_78 = arith.constant 0 : index
    %209 = vector.load %arg6[%c0_77, %c0_78] : memref<1x384xf32, #tpu.memory_space<vmem>>, vector<1x384xf32>
    %210 = arith.addf %208, %209 : vector<1x384xf32>
    %211 = arith.index_cast %c7_i32 : i32 to index
    %c0_79 = arith.constant 0 : index
    %212 = vector.load %arg9[%211, %c0_79] : memref<8x384xf32, #tpu.memory_space<vmem>>, vector<1x384xf32>
    %213 = vector.extract_strided_slice %212 {offsets = [0, 0], sizes = [1, 256], strides = [1, 1]} : vector<1x384xf32> to vector<1x256xf32>
    %214 = vector.extract_strided_slice %210 {offsets = [0, 0], sizes = [1, 256], strides = [1, 1]} : vector<1x384xf32> to vector<1x256xf32>
    %215 = arith.addf %213, %214 : vector<1x256xf32>
    %216 = arith.negf %215 : vector<1x256xf32>
    %217 = math.exp %216 : vector<1x256xf32>
    %cst_80 = arith.constant 1.000000e+00 : f32
    %218 = vector.broadcast %cst_80 : f32 to vector<1x256xf32>
    %219 = arith.addf %218, %217 : vector<1x256xf32>
    %220 = arith.divf %218, %219 : vector<1x256xf32>
    %221 = vector.extract_strided_slice %220 {offsets = [0, 0], sizes = [1, 128], strides = [1, 1]} : vector<1x256xf32> to vector<1x128xf32>
    %222 = vector.extract_strided_slice %220 {offsets = [0, 128], sizes = [1, 128], strides = [1, 1]} : vector<1x256xf32> to vector<1x128xf32>
    %223 = vector.extract_strided_slice %212 {offsets = [0, 256], sizes = [1, 128], strides = [1, 1]} : vector<1x384xf32> to vector<1x128xf32>
    %224 = vector.extract_strided_slice %210 {offsets = [0, 256], sizes = [1, 128], strides = [1, 1]} : vector<1x384xf32> to vector<1x128xf32>
    %225 = arith.mulf %221, %224 : vector<1x128xf32>
    %226 = arith.addf %223, %225 : vector<1x128xf32>
    %227 = math.tanh %226 : vector<1x128xf32>
    %cst_81 = arith.constant 1.000000e+00 : f32
    %228 = vector.broadcast %cst_81 : f32 to vector<1x128xf32>
    %229 = arith.subf %228, %222 : vector<1x128xf32>
    %230 = arith.mulf %229, %227 : vector<1x128xf32>
    %231 = arith.mulf %222, %204 : vector<1x128xf32>
    %232 = arith.addf %230, %231 : vector<1x128xf32>
    %233 = arith.index_cast %c7_i32 : i32 to index
    %c0_82 = arith.constant 0 : index
    %234 = vector.load %arg7[%233, %c0_82] : memref<8x128xf32, #tpu.memory_space<vmem>>, vector<1x128xf32>
    tpu.vector_store %arg7[%233, %c0_82], %232 {strides = array<i32>} : memref<8x128xf32, #tpu.memory_space<vmem>>, vector<1x128xf32>,
    %c8_i32 = arith.constant 8 : i32
    %c0_83 = arith.constant 0 : index
    %c0_84 = arith.constant 0 : index
    %235 = vector.load %arg8[%c0_83, %c0_84] : memref<1x128xf32, #tpu.memory_space<vmem>>, vector<1x128xf32>
    tpu.vector_store %arg8[%c0_83, %c0_84], %232 {strides = array<i32>} : memref<1x128xf32, #tpu.memory_space<vmem>>, vector<1x128xf32>,
    return
  }
  func.func @transform_0(%arg0: i32) -> (i32, i32) {
    %c0_i32 = arith.constant 0 : i32
    %c0_i32_0 = arith.constant 0 : i32
    return %arg0, %c0_i32 : i32, i32
  }
  func.func @transform_1(%arg0: i32) -> (i32, i32) {
    %c0_i32 = arith.constant 0 : i32
    %c0_i32_0 = arith.constant 0 : i32
    %c0_i32_1 = arith.constant 0 : i32
    return %c0_i32, %c0_i32_0 : i32, i32
  }
  func.func @transform_2(%arg0: i32) -> (i32, i32) {
    %c0_i32 = arith.constant 0 : i32
    %c0_i32_0 = arith.constant 0 : i32
    %c0_i32_1 = arith.constant 0 : i32
    return %c0_i32, %c0_i32_0 : i32, i32
  }
  func.func @transform_3(%arg0: i32) -> (i32, i32) {
    %c0_i32 = arith.constant 0 : i32
    %c0_i32_0 = arith.constant 0 : i32
    %c0_i32_1 = arith.constant 0 : i32
    return %c0_i32, %c0_i32_0 : i32, i32
  }
  func.func @transform_4(%arg0: i32) -> (i32, i32) {
    %c0_i32 = arith.constant 0 : i32
    %c0_i32_0 = arith.constant 0 : i32
    %c0_i32_1 = arith.constant 0 : i32
    return %c0_i32, %c0_i32_0 : i32, i32
  }
  func.func @transform_5(%arg0: i32) -> (i32, i32) {
    %c0_i32 = arith.constant 0 : i32
    %c0_i32_0 = arith.constant 0 : i32
    %c0_i32_1 = arith.constant 0 : i32
    return %c0_i32, %c0_i32_0 : i32, i32
  }
  func.func @transform_6(%arg0: i32) -> (i32, i32) {
    %c0_i32 = arith.constant 0 : i32
    %c0_i32_0 = arith.constant 0 : i32
    return %arg0, %c0_i32 : i32, i32
  }
}

</mosaic_0001>

<llo_original>
// kernel: tpu_custom_call.1
$region0: #{tpu_custom_call.1}
  #allocation0 [shape = 'u32[]', space=smem, size = 0x4, offset = 0x4, fixed_abs, tag = 'smem constant byte address 0x4 - core index']
  #allocation1 [shape = 'u32[144,128]{1,0:T(1,128)}', space=vmem, size = 0x12000, scoped, tag = 'internal scratch']
  #allocation2 [shape = 'f32[1,128]{1,0:T(1,128)}', space=vmem, size = 0x200, scoped, tag = 'scratch operand']
  #allocation3 [shape = 'f32[8,384]{1,0:T(8,128)}', space=vmem, size = 0x3000, scoped, tag = 'scratch operand']
  %s0 = inlined_call_operand.hbm [shape: f32[8,128], index: 0, kind: input, shape index: {}]
  %s1 = inlined_call_operand.vmem [shape: f32[1,128], index: 1, kind: input, shape index: {}]
  %s2 = inlined_call_operand.hbm [shape: f32[128,384], index: 2, kind: input, shape index: {}]
  %s3 = inlined_call_operand.hbm [shape: f32[128,384], index: 3, kind: input, shape index: {}]
  %s4 = inlined_call_operand.vmem [shape: f32[1,384], index: 4, kind: input, shape index: {}]
  %s5 = inlined_call_operand.vmem [shape: f32[1,384], index: 5, kind: input, shape index: {}]
  %s6 = inlined_call_operand.hbm [shape: f32[8,128], index: 6, kind: output, shape index: {}]
  %s7 = sld [smem:[#allocation0]]
  $region50: #{tpu_custom_call.1} parent=0
    _
  %s9 = ssub.s32 1, %s7
  %s10 = scalar_select 0, %s9, %s7
  $region1: #{tpu_custom_call.1} parent=0
    #allocation4 [shape = 'u8[4096]{0}', space=vmem, size = 0x1000, scoped, tag = 'input window, operand 0, single buffered']
    #allocation5 [shape = 's32[1]{0}', space=sflag, size = 0x4, scoped, tag = 'scoped memory for tpu_custom_call.1']
    #allocation6 [shape = 's32[1]{0}', space=sflag, size = 0x4, scoped, tag = 'scoped memory for tpu_custom_call.1']
    #allocation7 [shape = 'u8[196608]{0}', space=vmem, size = 0x30000, scoped, tag = 'input window, operand 2, single buffered']
    #allocation8 [shape = 's32[1]{0}', space=sflag, size = 0x4, scoped, tag = 'scoped memory for tpu_custom_call.1']
    #allocation9 [shape = 'u8[196608]{0}', space=vmem, size = 0x30000, scoped, tag = 'input window, operand 3, single buffered']
    #allocation10 [shape = 'u8[4096]{0}', space=vmem, size = 0x1000, scoped, tag = 'output window, operand 0, single buffered']
    %11 = vsyncpa [#allocation5], 0
    %12 = vsyncpa [#allocation8], 0
    %13 = vsyncpa [#allocation6], 0
    // Predicated region
    $region2: #{tpu_custom_call.1} parent=1 // pred_check
      _
    $region3: #{tpu_custom_call.1} parent=1 // pred_check_branch
      %15 = sbr.rel (0) target = $region5
    $region4: #{tpu_custom_call.1} parent=1 // pred_region
      %s17 = ssub.s32 128, 128
      %18 = vsyncadd [#allocation5], %s17
      %s20 = sshll.u32 [#allocation4], 4
      %s21 = int_to_ptr.vmem [resolvable:$true] %s20
      %23 = dma.hbm_to_vmem [thread:$0]  %s0, 128, %s21, [#allocation5]
    $region5: #{tpu_custom_call.1} parent=1 // pred_fallthru
      _
    // Predicated region
    $region6: #{tpu_custom_call.1} parent=1 // pred_check
      _
    $region7: #{tpu_custom_call.1} parent=1 // pred_check_branch
      %25 = sbr.rel (0) target = $region9
    $region8: #{tpu_custom_call.1} parent=1 // pred_region
      _
    $region9: #{tpu_custom_call.1} parent=1 // pred_fallthru
      _
    // Predicated region
    $region10: #{tpu_custom_call.1} parent=1 // pred_check
      _
    $region11: #{tpu_custom_call.1} parent=1 // pred_check_branch
      %27 = sbr.rel (0) target = $region13
    $region12: #{tpu_custom_call.1} parent=1 // pred_region
      %s29 = ssub.s32 6144, 6144
      %30 = vsyncadd [#allocation8], %s29
      %s31 = sshll.u32 [#allocation7], 4
      %s32 = int_to_ptr.vmem [resolvable:$true] %s31
      %37 = dma.hbm_to_vmem [thread:$0]  %s2, 6144, %s32, [#allocation8], 384, 384, 24
    $region13: #{tpu_custom_call.1} parent=1 // pred_fallthru
      _
    // Predicated region
    $region14: #{tpu_custom_call.1} parent=1 // pred_check
      _
    $region15: #{tpu_custom_call.1} parent=1 // pred_check_branch
      %39 = sbr.rel (0) target = $region17
    $region16: #{tpu_custom_call.1} parent=1 // pred_region
      %s41 = ssub.s32 6144, 6144
      %42 = vsyncadd [#allocation8], %s41
      %s43 = sshll.u32 [#allocation9], 4
      %s44 = int_to_ptr.vmem [resolvable:$true] %s43
      %49 = dma.hbm_to_vmem [thread:$0]  %s3, 6144, %s44, [#allocation8], 384, 384, 24
    $region17: #{tpu_custom_call.1} parent=1 // pred_fallthru
      _
    // Predicated region
    $region18: #{tpu_custom_call.1} parent=1 // pred_check
      _
    $region19: #{tpu_custom_call.1} parent=1 // pred_check_branch
      %51 = sbr.rel (0) target = $region21
    $region20: #{tpu_custom_call.1} parent=1 // pred_region
      _
    $region21: #{tpu_custom_call.1} parent=1 // pred_fallthru
      _
    // Predicated region
    $region22: #{tpu_custom_call.1} parent=1 // pred_check
      _
    $region23: #{tpu_custom_call.1} parent=1 // pred_check_branch
      %53 = sbr.rel (0) target = $region25
    $region24: #{tpu_custom_call.1} parent=1 // pred_region
      _
    $region25: #{tpu_custom_call.1} parent=1 // pred_fallthru
      _
    // Predicated region
    $region26: #{tpu_custom_call.1} parent=1 // pred_check
      _
    $region27: #{tpu_custom_call.1} parent=1 // pred_check_branch
      %55 = sbr.rel (0) target = $region29
    $region28: #{tpu_custom_call.1} parent=1 // pred_region
      %56 = dma.done [#allocation5], 128
    $region29: #{tpu_custom_call.1} parent=1 // pred_fallthru
      _
    // Predicated region
    $region30: #{tpu_custom_call.1} parent=1 // pred_check
      _
    $region31: #{tpu_custom_call.1} parent=1 // pred_check_branch
      %58 = sbr.rel (0) target = $region33
    $region32: #{tpu_custom_call.1} parent=1 // pred_region
      %59 = dma.done [#allocation8], 6144
    $region33: #{tpu_custom_call.1} parent=1 // pred_fallthru
      _
    // Predicated region
    $region34: #{tpu_custom_call.1} parent=1 // pred_check
      _
    $region35: #{tpu_custom_call.1} parent=1 // pred_check_branch
      %61 = sbr.rel (0) target = $region37
    $region36: #{tpu_custom_call.1} parent=1 // pred_region
      %62 = dma.done [#allocation8], 6144
    $region37: #{tpu_custom_call.1} parent=1 // pred_fallthru
      _
    %p63 = scmp.eq.s32.totalorder 0, 0
    // Predicated region
    $region38: #{tpu_custom_call.1} parent=1 // pred_check
      %p64 = pneg %p63
    $region39: #{tpu_custom_call.1} parent=1 // pred_check_branch
      %66 = sbr.rel (%p64) target = $region41
    $region40: #{tpu_custom_call.1} parent=1 // pred_region
      %v67 = vld [vmem:[%s1] sm:$0x1]
      %68 = vst [vmem:[#allocation2] sm:$0x1] %v67
    $region41: #{tpu_custom_call.1} parent=1 // pred_fallthru
      _
    %v69 = vld [vmem:[#allocation4] sm:$0xff]
    %v70 = vld [vmem:[#allocation7] sm:$0xff]
    %v71 = vld [vmem:[#allocation7 + $0x8] sm:$0xff]
    %v72 = vld [vmem:[#allocation7 + $0x10] sm:$0xff]
    %v73 = vld [vmem:[#allocation7 + $0x18] sm:$0xff]
    %v74 = vld [vmem:[#allocation7 + $0x20] sm:$0xff]
    %v75 = vld [vmem:[#allocation7 + $0x28] sm:$0xff]
    %v76 = vld [vmem:[#allocation7 + $0x30] sm:$0xff]
    %v77 = vld [vmem:[#allocation7 + $0x38] sm:$0xff]
    %v78 = vld [vmem:[#allocation7 + $0x40] sm:$0xff]
    %v79 = vld [vmem:[#allocation7 + $0x48] sm:$0xff]
    %v80 = vld [vmem:[#allocation7 + $0x50] sm:$0xff]
    %v81 = vld [vmem:[#allocation7 + $0x58] sm:$0xff]
    %v82 = vld [vmem:[#allocation7 + $0x60] sm:$0xff]
    %v83 = vld [vmem:[#allocation7 + $0x68] sm:$0xff]
    %v84 = vld [vmem:[#allocation7 + $0x70] sm:$0xff]
    %v85 = vld [vmem:[#allocation7 + $0x78] sm:$0xff]
    %v86 = vld [vmem:[#allocation7 + $0x80] sm:$0xff]
    %v87 = vld [vmem:[#allocation7 + $0x88] sm:$0xff]
    %v88 = vld [vmem:[#allocation7 + $0x90] sm:$0xff]
    %v89 = vld [vmem:[#allocation7 + $0x98] sm:$0xff]
    %v90 = vld [vmem:[#allocation7 + $0xa0] sm:$0xff]
    %v91 = vld [vmem:[#allocation7 + $0xa8] sm:$0xff]
    %v92 = vld [vmem:[#allocation7 + $0xb0] sm:$0xff]
    %v93 = vld [vmem:[#allocation7 + $0xb8] sm:$0xff]
    %v94 = vld [vmem:[#allocation7 + $0xc0] sm:$0xff]
    %v95 = vld [vmem:[#allocation7 + $0xc8] sm:$0xff]
    %v96 = vld [vmem:[#allocation7 + $0xd0] sm:$0xff]
    %v97 = vld [vmem:[#allocation7 + $0xd8] sm:$0xff]
    %v98 = vld [vmem:[#allocation7 + $0xe0] sm:$0xff]
    %v99 = vld [vmem:[#allocation7 + $0xe8] sm:$0xff]
    %v100 = vld [vmem:[#allocation7 + $0xf0] sm:$0xff]
    %v101 = vld [vmem:[#allocation7 + $0xf8] sm:$0xff]
    %v102 = vld [vmem:[#allocation7 + $0x100] sm:$0xff]
    %v103 = vld [vmem:[#allocation7 + $0x108] sm:$0xff]
    %v104 = vld [vmem:[#allocation7 + $0x110] sm:$0xff]
    %v105 = vld [vmem:[#allocation7 + $0x118] sm:$0xff]
    %v106 = vld [vmem:[#allocation7 + $0x120] sm:$0xff]
    %v107 = vld [vmem:[#allocation7 + $0x128] sm:$0xff]
    %v108 = vld [vmem:[#allocation7 + $0x130] sm:$0xff]
    %v109 = vld [vmem:[#allocation7 + $0x138] sm:$0xff]
    %v110 = vld [vmem:[#allocation7 + $0x140] sm:$0xff]
    %v111 = vld [vmem:[#allocation7 + $0x148] sm:$0xff]
    %v112 = vld [vmem:[#allocation7 + $0x150] sm:$0xff]
    %v113 = vld [vmem:[#allocation7 + $0x158] sm:$0xff]
    %v114 = vld [vmem:[#allocation7 + $0x160] sm:$0xff]
    %v115 = vld [vmem:[#allocation7 + $0x168] sm:$0xff]
    %v116 = vld [vmem:[#allocation7 + $0x170] sm:$0xff]
    %v117 = vld [vmem:[#allocation7 + $0x178] sm:$0xff]
    %v118 = vld [vmem:[%s4] sm:$0x7]
    %v120 = vlaneseq
    %v121 = vshrl.u32 %v120, 7
    %v122 = vsub.s32 0, %v121
    %v123 = vrot.slane %v118, %v122
    %v124 = vlaneseq
    %v125 = vshrl.u32 %v124, 7
    %v126 = vsub.s32 1, %v125
    %v127 = vrot.slane %v118, %v126
    %v128 = vlaneseq
    %v129 = vshrl.u32 %v128, 7
    %v130 = vsub.s32 2, %v129
    %v131 = vrot.slane %v118, %v130
    %135 = vmatprep.subr.mxu0 %v71
    %136 = vmatpush1.msra.mxu0 %v70
    %137 = vmatprep.subr.mxu0 %v74
    %138 = vmatpush1.msra.mxu0 %v73
    %139 = vmatprep.subr.mxu0 %v77
    %140 = vmatpush1.msra.mxu0 %v76
    %141 = vmatprep.subr.mxu0 %v80
    %142 = vmatpush1.msra.mxu0 %v79
    %143 = vmatprep.subr.mxu0 %v83
    %144 = vmatpush1.msra.mxu0 %v82
    %145 = vmatprep.subr.mxu0 %v86
    %146 = vmatpush1.msra.mxu0 %v85
    %147 = vmatprep.subr.mxu0 %v89
    %148 = vmatpush1.msra.mxu0 %v88
    %149 = vmatprep.subr.mxu0 %v92
    %150 = vmatpush1.msra.mxu0 %v91
    %151 = vmatprep.subr.mxu0 %v95
    %152 = vmatpush1.msra.mxu0 %v94
    %153 = vmatprep.subr.mxu0 %v98
    %154 = vmatpush1.msra.mxu0 %v97
    %155 = vmatprep.subr.mxu0 %v101
    %156 = vmatpush1.msra.mxu0 %v100
    %157 = vmatprep.subr.mxu0 %v104
    %158 = vmatpush1.msra.mxu0 %v103
    %159 = vmatprep.subr.mxu0 %v107
    %160 = vmatpush1.msra.mxu0 %v106
    %161 = vmatprep.subr.mxu0 %v110
    %162 = vmatpush1.msra.mxu0 %v109
    %163 = vmatprep.subr.mxu0 %v113
    %164 = vmatpush1.msra.mxu0 %v112
    %165 = vmatprep.subr.mxu0 %v116
    %166 = vmatpush1.msra.mxu0 %v115
    %167 = vmatprep.subr.mxu0 0.0
    %168 = vmatpush1.msra.mxu0 0.0
    %169 = vmatprep.subr.mxu0 0.0
    %170 = vmatpush1.msra.mxu0 0.0
    %171 = vmatprep.subr.mxu0 0.0
    %172 = vmatpush1.msra.mxu0 0.0
    %173 = vmatprep.subr.mxu0 0.0
    %174 = vmatpush1.msra.mxu0 0.0
    %175 = vmatprep.subr.mxu0 0.0
    %176 = vmatpush1.msra.mxu0 0.0
    %177 = vmatprep.subr.mxu0 0.0
    %178 = vmatpush1.msra.mxu0 0.0
    %179 = vmatprep.subr.mxu0 0.0
    %180 = vmatpush1.msra.mxu0 0.0
    %181 = vmatprep.subr.mxu0 0.0
    %182 = vmatpush1.msra.mxu0 0.0
    %183 = vmatprep.subr.mxu0 0.0
    %184 = vmatpush1.msra.mxu0 0.0
    %185 = vmatprep.subr.mxu0 0.0
    %186 = vmatpush1.msra.mxu0 0.0
    %187 = vmatprep.subr.mxu0 0.0
    %188 = vmatpush1.msra.mxu0 0.0
    %189 = vmatprep.subr.mxu0 0.0
    %190 = vmatpush1.msra.mxu0 0.0
    %191 = vmatprep.subr.mxu0 0.0
    %192 = vmatpush1.msra.mxu0 0.0
    %193 = vmatprep.subr.mxu0 0.0
    %194 = vmatpush1.msra.mxu0 0.0
    %195 = vmatprep.subr.mxu0 0.0
    %196 = vmatpush1.msra.mxu0 0.0
    %197 = vmatprep.subr.mxu0 0.0
    %198 = vmatpush1.msra.mxu0 0.0
    %199 = vmatprep.mubr.f32.mxu0 0.0
    %200 = vmatmul.mubr.f32.gmra.mrb[0].mxu0 %v69
    %v201 = vpop.f32.mrb[0].mxu0
    %v202 = vadd.f32 %v123, %v201
    %v203 = vpop.f32.mrb[0].mxu0
    %v204 = vadd.f32 %v127, %v203
    %205 = vdwg.mxu0
    %206 = vmatprep.subr.mxu0 0.0
    %207 = vmatpush1.msra.mxu0 %v72
    %208 = vmatprep.subr.mxu0 0.0
    %209 = vmatpush1.msra.mxu0 %v75
    %210 = vmatprep.subr.mxu0 0.0
    %211 = vmatpush1.msra.mxu0 %v78
    %212 = vmatprep.subr.mxu0 0.0
    %213 = vmatpush1.msra.mxu0 %v81
    %214 = vmatprep.subr.mxu0 0.0
    %215 = vmatpush1.msra.mxu0 %v84
    %216 = vmatprep.subr.mxu0 0.0
    %217 = vmatpush1.msra.mxu0 %v87
    %218 = vmatprep.subr.mxu0 0.0
    %219 = vmatpush1.msra.mxu0 %v90
    %220 = vmatprep.subr.mxu0 0.0
    %221 = vmatpush1.msra.mxu0 %v93
    %222 = vmatprep.subr.mxu0 0.0
    %223 = vmatpush1.msra.mxu0 %v96
    %224 = vmatprep.subr.mxu0 0.0
    %225 = vmatpush1.msra.mxu0 %v99
    %226 = vmatprep.subr.mxu0 0.0
    %227 = vmatpush1.msra.mxu0 %v102
    %228 = vmatprep.subr.mxu0 0.0
    %229 = vmatpush1.msra.mxu0 %v105
    %230 = vmatprep.subr.mxu0 0.0
    %231 = vmatpush1.msra.mxu0 %v108
    %232 = vmatprep.subr.mxu0 0.0
    %233 = vmatpush1.msra.mxu0 %v111
    %234 = vmatprep.subr.mxu0 0.0
    %235 = vmatpush1.msra.mxu0 %v114
    %236 = vmatprep.subr.mxu0 0.0
    %237 = vmatpush1.msra.mxu0 %v117
    %238 = vmatprep.subr.mxu0 0.0
    %239 = vmatpush1.msra.mxu0 0.0
    %240 = vmatprep.subr.mxu0 0.0
    %241 = vmatpush1.msra.mxu0 0.0
    %242 = vmatprep.subr.mxu0 0.0
    %243 = vmatpush1.msra.mxu0 0.0
    %244 = vmatprep.subr.mxu0 0.0
    %245 = vmatpush1.msra.mxu0 0.0
    %246 = vmatprep.subr.mxu0 0.0
    %247 = vmatpush1.msra.mxu0 0.0
    %248 = vmatprep.subr.mxu0 0.0
    %249 = vmatpush1.msra.mxu0 0.0
    %250 = vmatprep.subr.mxu0 0.0
    %251 = vmatpush1.msra.mxu0 0.0
    %252 = vmatprep.subr.mxu0 0.0
    %253 = vmatpush1.msra.mxu0 0.0
    %254 = vmatprep.subr.mxu0 0.0
    %255 = vmatpush1.msra.mxu0 0.0
    %256 = vmatprep.subr.mxu0 0.0
    %257 = vmatpush1.msra.mxu0 0.0
    %258 = vmatprep.subr.mxu0 0.0
    %259 = vmatpush1.msra.mxu0 0.0
    %260 = vmatprep.subr.mxu0 0.0
    %261 = vmatpush1.msra.mxu0 0.0
    %262 = vmatprep.subr.mxu0 0.0
    %263 = vmatpush1.msra.mxu0 0.0
    %264 = vmatprep.subr.mxu0 0.0
    %265 = vmatpush1.msra.mxu0 0.0
    %266 = vmatprep.subr.mxu0 0.0
    %267 = vmatpush1.msra.mxu0 0.0
    %268 = vmatprep.subr.mxu0 0.0
    %269 = vmatpush1.msra.mxu0 0.0
    %270 = vmatprep.mubr.f32.mxu0 0.0
    %271 = vmatmul.mubr.f32.gmra.mrb[0].mxu0 %v69
    %v272 = vpop.f32.mrb[0].mxu0
    %v273 = vadd.f32 %v131, %v272
    %v274 = vpop.f32.mrb[0].mxu0
    %275 = vdwg.mxu0
    %276 = vst [vmem:[#allocation3] sm:$0xff] %v202
    %277 = vst [vmem:[#allocation3 + $0x8] sm:$0xff] %v204
    %278 = vst [vmem:[#allocation3 + $0x10] sm:$0xff] %v273
    %v279 = vld [vmem:[#allocation2] sm:$0x1]
    %v280 = vld [vmem:[#allocation9] sm:$0xff]
    %v281 = vld [vmem:[#allocation9 + $0x8] sm:$0xff]
    %v282 = vld [vmem:[#allocation9 + $0x10] sm:$0xff]
    %v283 = vld [vmem:[#allocation9 + $0x18] sm:$0xff]
    %v284 = vld [vmem:[#allocation9 + $0x20] sm:$0xff]
    %v285 = vld [vmem:[#allocation9 + $0x28] sm:$0xff]
    %v286 = vld [vmem:[#allocation9 + $0x30] sm:$0xff]
    %v287 = vld [vmem:[#allocation9 + $0x38] sm:$0xff]
    %v288 = vld [vmem:[#allocation9 + $0x40] sm:$0xff]
    %v289 = vld [vmem:[#allocation9 + $0x48] sm:$0xff]
    %v290 = vld [vmem:[#allocation9 + $0x50] sm:$0xff]
    %v291 = vld [vmem:[#allocation9 + $0x58] sm:$0xff]
    %v292 = vld [vmem:[#allocation9 + $0x60] sm:$0xff]
    %v293 = vld [vmem:[#allocation9 + $0x68] sm:$0xff]
    %v294 = vld [vmem:[#allocation9 + $0x70] sm:$0xff]
    %v295 = vld [vmem:[#allocation9 + $0x78] sm:$0xff]
    %v296 = vld [vmem:[#allocation9 + $0x80] sm:$0xff]
    %v297 = vld [vmem:[#allocation9 + $0x88] sm:$0xff]
    %v298 = vld [vmem:[#allocation9 + $0x90] sm:$0xff]
    %v299 = vld [vmem:[#allocation9 + $0x98] sm:$0xff]
    %v300 = vld [vmem:[#allocation9 + $0xa0] sm:$0xff]
    %v301 = vld [vmem:[#allocation9 + $0xa8] sm:$0xff]
    %v302 = vld [vmem:[#allocation9 + $0xb0] sm:$0xff]
    %v303 = vld [vmem:[#allocation9 + $0xb8] sm:$0xff]
    %v304 = vld [vmem:[#allocation9 + $0xc0] sm:$0xff]
    %v305 = vld [vmem:[#allocation9 + $0xc8] sm:$0xff]
    %v306 = vld [vmem:[#allocation9 + $0xd0] sm:$0xff]
    %v307 = vld [vmem:[#allocation9 + $0xd8] sm:$0xff]
    %v308 = vld [vmem:[#allocation9 + $0xe0] sm:$0xff]
    %v309 = vld [vmem:[#allocation9 + $0xe8] sm:$0xff]
    %v310 = vld [vmem:[#allocation9 + $0xf0] sm:$0xff]
    %v311 = vld [vmem:[#allocation9 + $0xf8] sm:$0xff]
    %v312 = vld [vmem:[#allocation9 + $0x100] sm:$0xff]
    %v313 = vld [vmem:[#allocation9 + $0x108] sm:$0xff]
    %v314 = vld [vmem:[#allocation9 + $0x110] sm:$0xff]
    %v315 = vld [vmem:[#allocation9 + $0x118] sm:$0xff]
    %v316 = vld [vmem:[#allocation9 + $0x120] sm:$0xff]
    %v317 = vld [vmem:[#allocation9 + $0x128] sm:$0xff]
    %v318 = vld [vmem:[#allocation9 + $0x130] sm:$0xff]
    %v319 = vld [vmem:[#allocation9 + $0x138] sm:$0xff]
    %v320 = vld [vmem:[#allocation9 + $0x140] sm:$0xff]
    %v321 = vld [vmem:[#allocation9 + $0x148] sm:$0xff]
    %v322 = vld [vmem:[#allocation9 + $0x150] sm:$0xff]
    %v323 = vld [vmem:[#allocation9 + $0x158] sm:$0xff]
    %v324 = vld [vmem:[#allocation9 + $0x160] sm:$0xff]
    %v325 = vld [vmem:[#allocation9 + $0x168] sm:$0xff]
    %v326 = vld [vmem:[#allocation9 + $0x170] sm:$0xff]
    %v327 = vld [vmem:[#allocation9 + $0x178] sm:$0xff]
    %v328 = vld [vmem:[%s5] sm:$0x7]
    %v330 = vlaneseq
    %v331 = vshrl.u32 %v330, 7
    %v332 = vsub.s32 0, %v331
    %v333 = vrot.slane %v328, %v332
    %v334 = vlaneseq
    %v335 = vshrl.u32 %v334, 7
    %v336 = vsub.s32 1, %v335
    %v337 = vrot.slane %v328, %v336
    %v338 = vlaneseq
    %v339 = vshrl.u32 %v338, 7
    %v340 = vsub.s32 2, %v339
    %v341 = vrot.slane %v328, %v340
    %345 = vmatprep.subr.mxu0 %v281
    %346 = vmatpush1.msra.mxu0 %v280
    %347 = vmatprep.subr.mxu0 %v284
    %348 = vmatpush1.msra.mxu0 %v283
    %349 = vmatprep.subr.mxu0 %v287
    %350 = vmatpush1.msra.mxu0 %v286
    %351 = vmatprep.subr.mxu0 %v290
    %352 = vmatpush1.msra.mxu0 %v289
    %353 = vmatprep.subr.mxu0 %v293
    %354 = vmatpush1.msra.mxu0 %v292
    %355 = vmatprep.subr.mxu0 %v296
    %356 = vmatpush1.msra.mxu0 %v295
    %357 = vmatprep.subr.mxu0 %v299
    %358 = vmatpush1.msra.mxu0 %v298
    %359 = vmatprep.subr.mxu0 %v302
    %360 = vmatpush1.msra.mxu0 %v301
    %361 = vmatprep.subr.mxu0 %v305
    %362 = vmatpush1.msra.mxu0 %v304
    %363 = vmatprep.subr.mxu0 %v308
    %364 = vmatpush1.msra.mxu0 %v307
    %365 = vmatprep.subr.mxu0 %v311
    %366 = vmatpush1.msra.mxu0 %v310
    %367 = vmatprep.subr.mxu0 %v314
    %368 = vmatpush1.msra.mxu0 %v313
    %369 = vmatprep.subr.mxu0 %v317
    %370 = vmatpush1.msra.mxu0 %v316
    %371 = vmatprep.subr.mxu0 %v320
    %372 = vmatpush1.msra.mxu0 %v319
    %373 = vmatprep.subr.mxu0 %v323
    %374 = vmatpush1.msra.mxu0 %v322
    %375 = vmatprep.subr.mxu0 %v326
    %376 = vmatpush1.msra.mxu0 %v325
    %377 = vmatprep.subr.mxu0 0.0
    %378 = vmatpush1.msra.mxu0 0.0
    %379 = vmatprep.subr.mxu0 0.0
    %380 = vmatpush1.msra.mxu0 0.0
    %381 = vmatprep.subr.mxu0 0.0
    %382 = vmatpush1.msra.mxu0 0.0
    %383 = vmatprep.subr.mxu0 0.0
    %384 = vmatpush1.msra.mxu0 0.0
    %385 = vmatprep.subr.mxu0 0.0
    %386 = vmatpush1.msra.mxu0 0.0
    %387 = vmatprep.subr.mxu0 0.0
    %388 = vmatpush1.msra.mxu0 0.0
    %389 = vmatprep.subr.mxu0 0.0
    %390 = vmatpush1.msra.mxu0 0.0
    %391 = vmatprep.subr.mxu0 0.0
    %392 = vmatpush1.msra.mxu0 0.0
    %393 = vmatprep.subr.mxu0 0.0
    %394 = vmatpush1.msra.mxu0 0.0
    %395 = vmatprep.subr.mxu0 0.0
    %396 = vmatpush1.msra.mxu0 0.0
    %397 = vmatprep.subr.mxu0 0.0
    %398 = vmatpush1.msra.mxu0 0.0
    %399 = vmatprep.subr.mxu0 0.0
    %400 = vmatpush1.msra.mxu0 0.0
    %401 = vmatprep.subr.mxu0 0.0
    %402 = vmatpush1.msra.mxu0 0.0
    %403 = vmatprep.subr.mxu0 0.0
    %404 = vmatpush1.msra.mxu0 0.0
    %405 = vmatprep.subr.mxu0 0.0
    %406 = vmatpush1.msra.mxu0 0.0
    %407 = vmatprep.subr.mxu0 0.0
    %408 = vmatpush1.msra.mxu0 0.0
    %409 = vmatprep.mubr.f32.mxu0 0.0
    %410 = vmatmul.mubr.f32.gmra.mrb[0].mxu0 %v279
    %v411 = vpop.f32.mrb[0].mxu0
    %v412 = vadd.f32 %v333, %v411
    %v413 = vpop.f32.mrb[0].mxu0
    %v414 = vadd.f32 %v337, %v413
    %415 = vdwg.mxu0
    %416 = vmatprep.subr.mxu0 0.0
    %417 = vmatpush1.msra.mxu0 %v282
    %418 = vmatprep.subr.mxu0 0.0
    %419 = vmatpush1.msra.mxu0 %v285
    %420 = vmatprep.subr.mxu0 0.0
    %421 = vmatpush1.msra.mxu0 %v288
    %422 = vmatprep.subr.mxu0 0.0
    %423 = vmatpush1.msra.mxu0 %v291
    %424 = vmatprep.subr.mxu0 0.0
    %425 = vmatpush1.msra.mxu0 %v294
    %426 = vmatprep.subr.mxu0 0.0
    %427 = vmatpush1.msra.mxu0 %v297
    %428 = vmatprep.subr.mxu0 0.0
    %429 = vmatpush1.msra.mxu0 %v300
    %430 = vmatprep.subr.mxu0 0.0
    %431 = vmatpush1.msra.mxu0 %v303
    %432 = vmatprep.subr.mxu0 0.0
    %433 = vmatpush1.msra.mxu0 %v306
    %434 = vmatprep.subr.mxu0 0.0
    %435 = vmatpush1.msra.mxu0 %v309
    %436 = vmatprep.subr.mxu0 0.0
    %437 = vmatpush1.msra.mxu0 %v312
    %438 = vmatprep.subr.mxu0 0.0
    %439 = vmatpush1.msra.mxu0 %v315
    %440 = vmatprep.subr.mxu0 0.0
    %441 = vmatpush1.msra.mxu0 %v318
    %442 = vmatprep.subr.mxu0 0.0
    %443 = vmatpush1.msra.mxu0 %v321
    %444 = vmatprep.subr.mxu0 0.0
    %445 = vmatpush1.msra.mxu0 %v324
    %446 = vmatprep.subr.mxu0 0.0
    %447 = vmatpush1.msra.mxu0 %v327
    %448 = vmatprep.subr.mxu0 0.0
    %449 = vmatpush1.msra.mxu0 0.0
    %450 = vmatprep.subr.mxu0 0.0
    %451 = vmatpush1.msra.mxu0 0.0
    %452 = vmatprep.subr.mxu0 0.0
    %453 = vmatpush1.msra.mxu0 0.0
    %454 = vmatprep.subr.mxu0 0.0
    %455 = vmatpush1.msra.mxu0 0.0
    %456 = vmatprep.subr.mxu0 0.0
    %457 = vmatpush1.msra.mxu0 0.0
    %458 = vmatprep.subr.mxu0 0.0
    %459 = vmatpush1.msra.mxu0 0.0
    %460 = vmatprep.subr.mxu0 0.0
    %461 = vmatpush1.msra.mxu0 0.0
    %462 = vmatprep.subr.mxu0 0.0
    %463 = vmatpush1.msra.mxu0 0.0
    %464 = vmatprep.subr.mxu0 0.0
    %465 = vmatpush1.msra.mxu0 0.0
    %466 = vmatprep.subr.mxu0 0.0
    %467 = vmatpush1.msra.mxu0 0.0
    %468 = vmatprep.subr.mxu0 0.0
    %469 = vmatpush1.msra.mxu0 0.0
    %470 = vmatprep.subr.mxu0 0.0
    %471 = vmatpush1.msra.mxu0 0.0
    %472 = vmatprep.subr.mxu0 0.0
    %473 = vmatpush1.msra.mxu0 0.0
    %474 = vmatprep.subr.mxu0 0.0
    %475 = vmatpush1.msra.mxu0 0.0
    %476 = vmatprep.subr.mxu0 0.0
    %477 = vmatpush1.msra.mxu0 0.0
    %478 = vmatprep.subr.mxu0 0.0
    %479 = vmatpush1.msra.mxu0 0.0
    %480 = vmatprep.mubr.f32.mxu0 0.0
    %481 = vmatmul.mubr.f32.gmra.mrb[0].mxu0 %v279
    %v482 = vpop.f32.mrb[0].mxu0
    %v483 = vadd.f32 %v341, %v482
    %v484 = vpop.f32.mrb[0].mxu0
    %485 = vdwg.mxu0
    %v486 = vld [vmem:[#allocation3] ss:$8 sm:$0x7]
    %v489 = vcombine.low %v412, %v414
    %v491 = vunpack.c.l.s4 1966171168
    %v492 = vunpack.c.0.s8 %v491
    %v493 = vlaneseq
    %v494 = vshrl.u32 %v493, 7
    %v495 = vsub.s32 %v492, %v494
    %v496 = vrot.slane %v489, %v495
    %v498 = vunpack.c.l.s4 1966171168
    %v499 = vunpack.c.0.s8 %v498
    %v500 = vlaneseq
    %v501 = vshrl.u32 %v500, 7
    %v502 = vsub.s32 %v499, %v501
    %v503 = vrot.slane %v496, %v502
    %v505 = vadd.f32 %v486, %v503
    %v506 = vxor.u32 %v505, 2147483648
    %v507 = vmul.f32 %v506, 1.442695
    %v508 = vpow.pop %v507
    %v509 = vadd.f32 %v508, 1.0
    %v510 = vrcp.pop %v509
    %v511 = vmul.f32 1.0, %v510
    %v512 = vmul.f32 %v511, %v483
    %v514 = vrot.slane %v486, 2
    %v516 = vadd.f32 %v514, %v512
    %v517 = vtanh.pop %v516
    %v519 = vrot.slane %v511, 1
    %v521 = vsub.f32 1.0, %v519
    %v522 = vmul.f32 %v521, %v517
    %v523 = vmul.f32 %v519, %v279
    %v524 = vadd.f32 %v522, %v523
    %525 = vst [vmem:[#allocation10] sm:$0x1] %v524
    %v526 = vld [vmem:[#allocation9] sm:$0xff]
    %v527 = vld [vmem:[#allocation9 + $0x8] sm:$0xff]
    %v528 = vld [vmem:[#allocation9 + $0x10] sm:$0xff]
    %v529 = vld [vmem:[#allocation9 + $0x18] sm:$0xff]
    %v530 = vld [vmem:[#allocation9 + $0x20] sm:$0xff]
    %v531 = vld [vmem:[#allocation9 + $0x28] sm:$0xff]
    %v532 = vld [vmem:[#allocation9 + $0x30] sm:$0xff]
    %v533 = vld [vmem:[#allocation9 + $0x38] sm:$0xff]
    %v534 = vld [vmem:[#allocation9 + $0x40] sm:$0xff]
    %v535 = vld [vmem:[#allocation9 + $0x48] sm:$0xff]
    %v536 = vld [vmem:[#allocation9 + $0x50] sm:$0xff]
    %v537 = vld [vmem:[#allocation9 + $0x58] sm:$0xff]
    %v538 = vld [vmem:[#allocation9 + $0x60] sm:$0xff]
    %v539 = vld [vmem:[#allocation9 + $0x68] sm:$0xff]
    %v540 = vld [vmem:[#allocation9 + $0x70] sm:$0xff]
    %v541 = vld [vmem:[#allocation9 + $0x78] sm:$0xff]
    %v542 = vld [vmem:[#allocation9 + $0x80] sm:$0xff]
    %v543 = vld [vmem:[#allocation9 + $0x88] sm:$0xff]
    %v544 = vld [vmem:[#allocation9 + $0x90] sm:$0xff]
    %v545 = vld [vmem:[#allocation9 + $0x98] sm:$0xff]
    %v546 = vld [vmem:[#allocation9 + $0xa0] sm:$0xff]
    %v547 = vld [vmem:[#allocation9 + $0xa8] sm:$0xff]
    %v548 = vld [vmem:[#allocation9 + $0xb0] sm:$0xff]
    %v549 = vld [vmem:[#allocation9 + $0xb8] sm:$0xff]
    %v550 = vld [vmem:[#allocation9 + $0xc0] sm:$0xff]
    %v551 = vld [vmem:[#allocation9 + $0xc8] sm:$0xff]
    %v552 = vld [vmem:[#allocation9 + $0xd0] sm:$0xff]
    %v553 = vld [vmem:[#allocation9 + $0xd8] sm:$0xff]
    %v554 = vld [vmem:[#allocation9 + $0xe0] sm:$0xff]
    %v555 = vld [vmem:[#allocation9 + $0xe8] sm:$0xff]
    %v556 = vld [vmem:[#allocation9 + $0xf0] sm:$0xff]
    %v557 = vld [vmem:[#allocation9 + $0xf8] sm:$0xff]
    %v558 = vld [vmem:[#allocation9 + $0x100] sm:$0xff]
    %v559 = vld [vmem:[#allocation9 + $0x108] sm:$0xff]
    %v560 = vld [vmem:[#allocation9 + $0x110] sm:$0xff]
    %v561 = vld [vmem:[#allocation9 + $0x118] sm:$0xff]
    %v562 = vld [vmem:[#allocation9 + $0x120] sm:$0xff]
    %v563 = vld [vmem:[#allocation9 + $0x128] sm:$0xff]
    %v564 = vld [vmem:[#allocation9 + $0x130] sm:$0xff]
    %v565 = vld [vmem:[#allocation9 + $0x138] sm:$0xff]
    %v566 = vld [vmem:[#allocation9 + $0x140] sm:$0xff]
    %v567 = vld [vmem:[#allocation9 + $0x148] sm:$0xff]
    %v568 = vld [vmem:[#allocation9 + $0x150] sm:$0xff]
    %v569 = vld [vmem:[#allocation9 + $0x158] sm:$0xff]
    %v570 = vld [vmem:[#allocation9 + $0x160] sm:$0xff]
    %v571 = vld [vmem:[#allocation9 + $0x168] sm:$0xff]
    %v572 = vld [vmem:[#allocation9 + $0x170] sm:$0xff]
    %v573 = vld [vmem:[#allocation9 + $0x178] sm:$0xff]
    %v574 = vld [vmem:[%s5] sm:$0x7]
    %v576 = vlaneseq
    %v577 = vshrl.u32 %v576, 7
    %v578 = vsub.s32 0, %v577
    %v579 = vrot.slane %v574, %v578
    %v580 = vlaneseq
    %v581 = vshrl.u32 %v580, 7
    %v582 = vsub.s32 1, %v581
    %v583 = vrot.slane %v574, %v582
    %v584 = vlaneseq
    %v585 = vshrl.u32 %v584, 7
    %v586 = vsub.s32 2, %v585
    %v587 = vrot.slane %v574, %v586
    %591 = vmatprep.subr.mxu0 %v527
    %592 = vmatpush1.msra.mxu0 %v526
    %593 = vmatprep.subr.mxu0 %v530
    %594 = vmatpush1.msra.mxu0 %v529
    %595 = vmatprep.subr.mxu0 %v533
    %596 = vmatpush1.msra.mxu0 %v532
    %597 = vmatprep.subr.mxu0 %v536
    %598 = vmatpush1.msra.mxu0 %v535
    %599 = vmatprep.subr.mxu0 %v539
    %600 = vmatpush1.msra.mxu0 %v538
    %601 = vmatprep.subr.mxu0 %v542
    %602 = vmatpush1.msra.mxu0 %v541
    %603 = vmatprep.subr.mxu0 %v545
    %604 = vmatpush1.msra.mxu0 %v544
    %605 = vmatprep.subr.mxu0 %v548
    %606 = vmatpush1.msra.mxu0 %v547
    %607 = vmatprep.subr.mxu0 %v551
    %608 = vmatpush1.msra.mxu0 %v550
    %609 = vmatprep.subr.mxu0 %v554
    %610 = vmatpush1.msra.mxu0 %v553
    %611 = vmatprep.subr.mxu0 %v557
    %612 = vmatpush1.msra.mxu0 %v556
    %613 = vmatprep.subr.mxu0 %v560
    %614 = vmatpush1.msra.mxu0 %v559
    %615 = vmatprep.subr.mxu0 %v563
    %616 = vmatpush1.msra.mxu0 %v562
    %617 = vmatprep.subr.mxu0 %v566
    %618 = vmatpush1.msra.mxu0 %v565
    %619 = vmatprep.subr.mxu0 %v569
    %620 = vmatpush1.msra.mxu0 %v568
    %621 = vmatprep.subr.mxu0 %v572
    %622 = vmatpush1.msra.mxu0 %v571
    %623 = vmatprep.subr.mxu0 0.0
    %624 = vmatpush1.msra.mxu0 0.0
    %625 = vmatprep.subr.mxu0 0.0
    %626 = vmatpush1.msra.mxu0 0.0
    %627 = vmatprep.subr.mxu0 0.0
    %628 = vmatpush1.msra.mxu0 0.0
    %629 = vmatprep.subr.mxu0 0.0
    %630 = vmatpush1.msra.mxu0 0.0
    %631 = vmatprep.subr.mxu0 0.0
    %632 = vmatpush1.msra.mxu0 0.0
    %633 = vmatprep.subr.mxu0 0.0
    %634 = vmatpush1.msra.mxu0 0.0
    %635 = vmatprep.subr.mxu0 0.0
    %636 = vmatpush1.msra.mxu0 0.0
    %637 = vmatprep.subr.mxu0 0.0
    %638 = vmatpush1.msra.mxu0 0.0
    %639 = vmatprep.subr.mxu0 0.0
    %640 = vmatpush1.msra.mxu0 0.0
    %641 = vmatprep.subr.mxu0 0.0
    %642 = vmatpush1.msra.mxu0 0.0
    %643 = vmatprep.subr.mxu0 0.0
    %644 = vmatpush1.msra.mxu0 0.0
    %645 = vmatprep.subr.mxu0 0.0
    %646 = vmatpush1.msra.mxu0 0.0
    %647 = vmatprep.subr.mxu0 0.0
    %648 = vmatpush1.msra.mxu0 0.0
    %649 = vmatprep.subr.mxu0 0.0
    %650 = vmatpush1.msra.mxu0 0.0
    %651 = vmatprep.subr.mxu0 0.0
    %652 = vmatpush1.msra.mxu0 0.0
    %653 = vmatprep.subr.mxu0 0.0
    %654 = vmatpush1.msra.mxu0 0.0
    %655 = vmatprep.mubr.f32.mxu0 0.0
    %656 = vmatmul.mubr.f32.gmra.mrb[0].mxu0 %v524
    %v657 = vpop.f32.mrb[0].mxu0
    %v658 = vadd.f32 %v579, %v657
    %v659 = vpop.f32.mrb[0].mxu0
    %v660 = vadd.f32 %v583, %v659
    %661 = vdwg.mxu0
    %662 = vmatprep.subr.mxu0 0.0
    %663 = vmatpush1.msra.mxu0 %v528
    %664 = vmatprep.subr.mxu0 0.0
    %665 = vmatpush1.msra.mxu0 %v531
    %666 = vmatprep.subr.mxu0 0.0
    %667 = vmatpush1.msra.mxu0 %v534
    %668 = vmatprep.subr.mxu0 0.0
    %669 = vmatpush1.msra.mxu0 %v537
    %670 = vmatprep.subr.mxu0 0.0
    %671 = vmatpush1.msra.mxu0 %v540
    %672 = vmatprep.subr.mxu0 0.0
    %673 = vmatpush1.msra.mxu0 %v543
    %674 = vmatprep.subr.mxu0 0.0
    %675 = vmatpush1.msra.mxu0 %v546
    %676 = vmatprep.subr.mxu0 0.0
    %677 = vmatpush1.msra.mxu0 %v549
    %678 = vmatprep.subr.mxu0 0.0
    %679 = vmatpush1.msra.mxu0 %v552
    %680 = vmatprep.subr.mxu0 0.0
    %681 = vmatpush1.msra.mxu0 %v555
    %682 = vmatprep.subr.mxu0 0.0
    %683 = vmatpush1.msra.mxu0 %v558
    %684 = vmatprep.subr.mxu0 0.0
    %685 = vmatpush1.msra.mxu0 %v561
    %686 = vmatprep.subr.mxu0 0.0
    %687 = vmatpush1.msra.mxu0 %v564
    %688 = vmatprep.subr.mxu0 0.0
    %689 = vmatpush1.msra.mxu0 %v567
    %690 = vmatprep.subr.mxu0 0.0
    %691 = vmatpush1.msra.mxu0 %v570
    %692 = vmatprep.subr.mxu0 0.0
    %693 = vmatpush1.msra.mxu0 %v573
    %694 = vmatprep.subr.mxu0 0.0
    %695 = vmatpush1.msra.mxu0 0.0
    %696 = vmatprep.subr.mxu0 0.0
    %697 = vmatpush1.msra.mxu0 0.0
    %698 = vmatprep.subr.mxu0 0.0
    %699 = vmatpush1.msra.mxu0 0.0
    %700 = vmatprep.subr.mxu0 0.0
    %701 = vmatpush1.msra.mxu0 0.0
    %702 = vmatprep.subr.mxu0 0.0
    %703 = vmatpush1.msra.mxu0 0.0
    %704 = vmatprep.subr.mxu0 0.0
    %705 = vmatpush1.msra.mxu0 0.0
    %706 = vmatprep.subr.mxu0 0.0
    %707 = vmatpush1.msra.mxu0 0.0
    %708 = vmatprep.subr.mxu0 0.0
    %709 = vmatpush1.msra.mxu0 0.0
    %710 = vmatprep.subr.mxu0 0.0
    %711 = vmatpush1.msra.mxu0 0.0
    %712 = vmatprep.subr.mxu0 0.0
    %713 = vmatpush1.msra.mxu0 0.0
    %714 = vmatprep.subr.mxu0 0.0
    %715 = vmatpush1.msra.mxu0 0.0
    %716 = vmatprep.subr.mxu0 0.0
    %717 = vmatpush1.msra.mxu0 0.0
    %718 = vmatprep.subr.mxu0 0.0
    %719 = vmatpush1.msra.mxu0 0.0
    %720 = vmatprep.subr.mxu0 0.0
    %721 = vmatpush1.msra.mxu0 0.0
    %722 = vmatprep.subr.mxu0 0.0
    %723 = vmatpush1.msra.mxu0 0.0
    %724 = vmatprep.subr.mxu0 0.0
    %725 = vmatpush1.msra.mxu0 0.0
    %726 = vmatprep.mubr.f32.mxu0 0.0
    %727 = vmatmul.mubr.f32.gmra.mrb[0].mxu0 %v524
    %v728 = vpop.f32.mrb[0].mxu0
    %v729 = vadd.f32 %v587, %v728
    %v730 = vpop.f32.mrb[0].mxu0
    %731 = vdwg.mxu0
    %s732 = scalar_lea.vmem [#allocation3], 1
    %v733 = vld [vmem:[%s732] ss:$8 sm:$0x7]
    %v736 = vcombine.low %v658, %v660
    %v738 = vunpack.c.l.s4 1966171168
    %v739 = vunpack.c.0.s8 %v738
    %v740 = vlaneseq
    %v741 = vshrl.u32 %v740, 7
    %v742 = vsub.s32 %v739, %v741
    %v743 = vrot.slane %v736, %v742
    %v745 = vunpack.c.l.s4 1966171168
    %v746 = vunpack.c.0.s8 %v745
    %v747 = vlaneseq
    %v748 = vshrl.u32 %v747, 7
    %v749 = vsub.s32 %v746, %v748
    %v750 = vrot.slane %v743, %v749
    %v752 = vadd.f32 %v733, %v750
    %v753 = vxor.u32 %v752, 2147483648
    %v754 = vmul.f32 %v753, 1.442695
    %v755 = vpow.pop %v754
    %v756 = vadd.f32 %v755, 1.0
    %v757 = vrcp.pop %v756
    %v758 = vmul.f32 1.0, %v757
    %v759 = vmul.f32 %v758, %v729
    %v761 = vrot.slane %v733, 2
    %v763 = vadd.f32 %v761, %v759
    %v764 = vtanh.pop %v763
    %v766 = vrot.slane %v758, 1
    %v768 = vsub.f32 1.0, %v766
    %v769 = vmul.f32 %v768, %v764
    %v770 = vmul.f32 %v766, %v524
    %v771 = vadd.f32 %v769, %v770
    %772 = vst [vmem:[#allocation10 + $0x1] sm:$0x1] %v771
    %v773 = vld [vmem:[#allocation9] sm:$0xff]
    %v774 = vld [vmem:[#allocation9 + $0x8] sm:$0xff]
    %v775 = vld [vmem:[#allocation9 + $0x10] sm:$0xff]
    %v776 = vld [vmem:[#allocation9 + $0x18] sm:$0xff]
    %v777 = vld [vmem:[#allocation9 + $0x20] sm:$0xff]
    %v778 = vld [vmem:[#allocation9 + $0x28] sm:$0xff]
    %v779 = vld [vmem:[#allocation9 + $0x30] sm:$0xff]
    %v780 = vld [vmem:[#allocation9 + $0x38] sm:$0xff]
    %v781 = vld [vmem:[#allocation9 + $0x40] sm:$0xff]
    %v782 = vld [vmem:[#allocation9 + $0x48] sm:$0xff]
    %v783 = vld [vmem:[#allocation9 + $0x50] sm:$0xff]
    %v784 = vld [vmem:[#allocation9 + $0x58] sm:$0xff]
    %v785 = vld [vmem:[#allocation9 + $0x60] sm:$0xff]
    %v786 = vld [vmem:[#allocation9 + $0x68] sm:$0xff]
    %v787 = vld [vmem:[#allocation9 + $0x70] sm:$0xff]
    %v788 = vld [vmem:[#allocation9 + $0x78] sm:$0xff]
    %v789 = vld [vmem:[#allocation9 + $0x80] sm:$0xff]
    %v790 = vld [vmem:[#allocation9 + $0x88] sm:$0xff]
    %v791 = vld [vmem:[#allocation9 + $0x90] sm:$0xff]
    %v792 = vld [vmem:[#allocation9 + $0x98] sm:$0xff]
    %v793 = vld [vmem:[#allocation9 + $0xa0] sm:$0xff]
    %v794 = vld [vmem:[#allocation9 + $0xa8] sm:$0xff]
    %v795 = vld [vmem:[#allocation9 + $0xb0] sm:$0xff]
    %v796 = vld [vmem:[#allocation9 + $0xb8] sm:$0xff]
    %v797 = vld [vmem:[#allocation9 + $0xc0] sm:$0xff]
    %v798 = vld [vmem:[#allocation9 + $0xc8] sm:$0xff]
    %v799 = vld [vmem:[#allocation9 + $0xd0] sm:$0xff]
    %v800 = vld [vmem:[#allocation9 + $0xd8] sm:$0xff]
    %v801 = vld [vmem:[#allocation9 + $0xe0] sm:$0xff]
    %v802 = vld [vmem:[#allocation9 + $0xe8] sm:$0xff]
    %v803 = vld [vmem:[#allocation9 + $0xf0] sm:$0xff]
    %v804 = vld [vmem:[#allocation9 + $0xf8] sm:$0xff]
    %v805 = vld [vmem:[#allocation9 + $0x100] sm:$0xff]
    %v806 = vld [vmem:[#allocation9 + $0x108] sm:$0xff]
    %v807 = vld [vmem:[#allocation9 + $0x110] sm:$0xff]
    %v808 = vld [vmem:[#allocation9 + $0x118] sm:$0xff]
    %v809 = vld [vmem:[#allocation9 + $0x120] sm:$0xff]
    %v810 = vld [vmem:[#allocation9 + $0x128] sm:$0xff]
    %v811 = vld [vmem:[#allocation9 + $0x130] sm:$0xff]
    %v812 = vld [vmem:[#allocation9 + $0x138] sm:$0xff]
    %v813 = vld [vmem:[#allocation9 + $0x140] sm:$0xff]
    %v814 = vld [vmem:[#allocation9 + $0x148] sm:$0xff]
    %v815 = vld [vmem:[#allocation9 + $0x150] sm:$0xff]
    %v816 = vld [vmem:[#allocation9 + $0x158] sm:$0xff]
    %v817 = vld [vmem:[#allocation9 + $0x160] sm:$0xff]
    %v818 = vld [vmem:[#allocation9 + $0x168] sm:$0xff]
    %v819 = vld [vmem:[#allocation9 + $0x170] sm:$0xff]
    %v820 = vld [vmem:[#allocation9 + $0x178] sm:$0xff]
    %v821 = vld [vmem:[%s5] sm:$0x7]
    %v823 = vlaneseq
    %v824 = vshrl.u32 %v823, 7
    %v825 = vsub.s32 0, %v824
    %v826 = vrot.slane %v821, %v825
    %v827 = vlaneseq
    %v828 = vshrl.u32 %v827, 7
    %v829 = vsub.s32 1, %v828
    %v830 = vrot.slane %v821, %v829
    %v831 = vlaneseq
    %v832 = vshrl.u32 %v831, 7
    %v833 = vsub.s32 2, %v832
    %v834 = vrot.slane %v821, %v833
    %838 = vmatprep.subr.mxu0 %v774
    %839 = vmatpush1.msra.mxu0 %v773
    %840 = vmatprep.subr.mxu0 %v777
    %841 = vmatpush1.msra.mxu0 %v776
    %842 = vmatprep.subr.mxu0 %v780
    %843 = vmatpush1.msra.mxu0 %v779
    %844 = vmatprep.subr.mxu0 %v783
    %845 = vmatpush1.msra.mxu0 %v782
    %846 = vmatprep.subr.mxu0 %v786
    %847 = vmatpush1.msra.mxu0 %v785
    %848 = vmatprep.subr.mxu0 %v789
    %849 = vmatpush1.msra.mxu0 %v788
    %850 = vmatprep.subr.mxu0 %v792
    %851 = vmatpush1.msra.mxu0 %v791
    %852 = vmatprep.subr.mxu0 %v795
    %853 = vmatpush1.msra.mxu0 %v794
    %854 = vmatprep.subr.mxu0 %v798
    %855 = vmatpush1.msra.mxu0 %v797
    %856 = vmatprep.subr.mxu0 %v801
    %857 = vmatpush1.msra.mxu0 %v800
    %858 = vmatprep.subr.mxu0 %v804
    %859 = vmatpush1.msra.mxu0 %v803
    %860 = vmatprep.subr.mxu0 %v807
    %861 = vmatpush1.msra.mxu0 %v806
    %862 = vmatprep.subr.mxu0 %v810
    %863 = vmatpush1.msra.mxu0 %v809
    %864 = vmatprep.subr.mxu0 %v813
    %865 = vmatpush1.msra.mxu0 %v812
    %866 = vmatprep.subr.mxu0 %v816
    %867 = vmatpush1.msra.mxu0 %v815
    %868 = vmatprep.subr.mxu0 %v819
    %869 = vmatpush1.msra.mxu0 %v818
    %870 = vmatprep.subr.mxu0 0.0
    %871 = vmatpush1.msra.mxu0 0.0
    %872 = vmatprep.subr.mxu0 0.0
    %873 = vmatpush1.msra.mxu0 0.0
    %874 = vmatprep.subr.mxu0 0.0
    %875 = vmatpush1.msra.mxu0 0.0
    %876 = vmatprep.subr.mxu0 0.0
    %877 = vmatpush1.msra.mxu0 0.0
    %878 = vmatprep.subr.mxu0 0.0
    %879 = vmatpush1.msra.mxu0 0.0
    %880 = vmatprep.subr.mxu0 0.0
    %881 = vmatpush1.msra.mxu0 0.0
    %882 = vmatprep.subr.mxu0 0.0
    %883 = vmatpush1.msra.mxu0 0.0
    %884 = vmatprep.subr.mxu0 0.0
    %885 = vmatpush1.msra.mxu0 0.0
    %886 = vmatprep.subr.mxu0 0.0
    %887 = vmatpush1.msra.mxu0 0.0
    %888 = vmatprep.subr.mxu0 0.0
    %889 = vmatpush1.msra.mxu0 0.0
    %890 = vmatprep.subr.mxu0 0.0
    %891 = vmatpush1.msra.mxu0 0.0
    %892 = vmatprep.subr.mxu0 0.0
    %893 = vmatpush1.msra.mxu0 0.0
    %894 = vmatprep.subr.mxu0 0.0
    %895 = vmatpush1.msra.mxu0 0.0
    %896 = vmatprep.subr.mxu0 0.0
    %897 = vmatpush1.msra.mxu0 0.0
    %898 = vmatprep.subr.mxu0 0.0
    %899 = vmatpush1.msra.mxu0 0.0
    %900 = vmatprep.subr.mxu0 0.0
    %901 = vmatpush1.msra.mxu0 0.0
    %902 = vmatprep.mubr.f32.mxu0 0.0
    %903 = vmatmul.mubr.f32.gmra.mrb[0].mxu0 %v771
    %v904 = vpop.f32.mrb[0].mxu0
    %v905 = vadd.f32 %v826, %v904
    %v906 = vpop.f32.mrb[0].mxu0
    %v907 = vadd.f32 %v830, %v906
    %908 = vdwg.mxu0
    %909 = vmatprep.subr.mxu0 0.0
    %910 = vmatpush1.msra.mxu0 %v775
    %911 = vmatprep.subr.mxu0 0.0
    %912 = vmatpush1.msra.mxu0 %v778
    %913 = vmatprep.subr.mxu0 0.0
    %914 = vmatpush1.msra.mxu0 %v781
    %915 = vmatprep.subr.mxu0 0.0
    %916 = vmatpush1.msra.mxu0 %v784
    %917 = vmatprep.subr.mxu0 0.0
    %918 = vmatpush1.msra.mxu0 %v787
    %919 = vmatprep.subr.mxu0 0.0
    %920 = vmatpush1.msra.mxu0 %v790
    %921 = vmatprep.subr.mxu0 0.0
    %922 = vmatpush1.msra.mxu0 %v793
    %923 = vmatprep.subr.mxu0 0.0
    %924 = vmatpush1.msra.mxu0 %v796
    %925 = vmatprep.subr.mxu0 0.0
    %926 = vmatpush1.msra.mxu0 %v799
    %927 = vmatprep.subr.mxu0 0.0
    %928 = vmatpush1.msra.mxu0 %v802
    %929 = vmatprep.subr.mxu0 0.0
    %930 = vmatpush1.msra.mxu0 %v805
    %931 = vmatprep.subr.mxu0 0.0
    %932 = vmatpush1.msra.mxu0 %v808
    %933 = vmatprep.subr.mxu0 0.0
    %934 = vmatpush1.msra.mxu0 %v811
    %935 = vmatprep.subr.mxu0 0.0
    %936 = vmatpush1.msra.mxu0 %v814
    %937 = vmatprep.subr.mxu0 0.0
    %938 = vmatpush1.msra.mxu0 %v817
    %939 = vmatprep.subr.mxu0 0.0
    %940 = vmatpush1.msra.mxu0 %v820
    %941 = vmatprep.subr.mxu0 0.0
    %942 = vmatpush1.msra.mxu0 0.0
    %943 = vmatprep.subr.mxu0 0.0
    %944 = vmatpush1.msra.mxu0 0.0
    %945 = vmatprep.subr.mxu0 0.0
    %946 = vmatpush1.msra.mxu0 0.0
    %947 = vmatprep.subr.mxu0 0.0
    %948 = vmatpush1.msra.mxu0 0.0
    %949 = vmatprep.subr.mxu0 0.0
    %950 = vmatpush1.msra.mxu0 0.0
    %951 = vmatprep.subr.mxu0 0.0
    %952 = vmatpush1.msra.mxu0 0.0
    %953 = vmatprep.subr.mxu0 0.0
    %954 = vmatpush1.msra.mxu0 0.0
    %955 = vmatprep.subr.mxu0 0.0
    %956 = vmatpush1.msra.mxu0 0.0
    %957 = vmatprep.subr.mxu0 0.0
    %958 = vmatpush1.msra.mxu0 0.0
    %959 = vmatprep.subr.mxu0 0.0
    %960 = vmatpush1.msra.mxu0 0.0
    %961 = vmatprep.subr.mxu0 0.0
    %962 = vmatpush1.msra.mxu0 0.0
    %963 = vmatprep.subr.mxu0 0.0
    %964 = vmatpush1.msra.mxu0 0.0
    %965 = vmatprep.subr.mxu0 0.0
    %966 = vmatpush1.msra.mxu0 0.0
    %967 = vmatprep.subr.mxu0 0.0
    %968 = vmatpush1.msra.mxu0 0.0
    %969 = vmatprep.subr.mxu0 0.0
    %970 = vmatpush1.msra.mxu0 0.0
    %971 = vmatprep.subr.mxu0 0.0
    %972 = vmatpush1.msra.mxu0 0.0
    %973 = vmatprep.mubr.f32.mxu0 0.0
    %974 = vmatmul.mubr.f32.gmra.mrb[0].mxu0 %v771
    %v975 = vpop.f32.mrb[0].mxu0
    %v976 = vadd.f32 %v834, %v975
    %v977 = vpop.f32.mrb[0].mxu0
    %978 = vdwg.mxu0
    %s979 = scalar_lea.vmem [#allocation3], 2
    %v980 = vld [vmem:[%s979] ss:$8 sm:$0x7]
    %v983 = vcombine.low %v905, %v907
    %v985 = vunpack.c.l.s4 1966171168
    %v986 = vunpack.c.0.s8 %v985
    %v987 = vlaneseq
    %v988 = vshrl.u32 %v987, 7
    %v989 = vsub.s32 %v986, %v988
    %v990 = vrot.slane %v983, %v989
    %v992 = vunpack.c.l.s4 1966171168
    %v993 = vunpack.c.0.s8 %v992
    %v994 = vlaneseq
    %v995 = vshrl.u32 %v994, 7
    %v996 = vsub.s32 %v993, %v995
    %v997 = vrot.slane %v990, %v996
    %v999 = vadd.f32 %v980, %v997
    %v1000 = vxor.u32 %v999, 2147483648
    %v1001 = vmul.f32 %v1000, 1.442695
    %v1002 = vpow.pop %v1001
    %v1003 = vadd.f32 %v1002, 1.0
    %v1004 = vrcp.pop %v1003
    %v1005 = vmul.f32 1.0, %v1004
    %v1006 = vmul.f32 %v1005, %v976
    %v1008 = vrot.slane %v980, 2
    %v1010 = vadd.f32 %v1008, %v1006
    %v1011 = vtanh.pop %v1010
    %v1013 = vrot.slane %v1005, 1
    %v1015 = vsub.f32 1.0, %v1013
    %v1016 = vmul.f32 %v1015, %v1011
    %v1017 = vmul.f32 %v1013, %v771
    %v1018 = vadd.f32 %v1016, %v1017
    %1019 = vst [vmem:[#allocation10 + $0x2] sm:$0x1] %v1018
    %v1020 = vld [vmem:[#allocation9] sm:$0xff]
    %v1021 = vld [vmem:[#allocation9 + $0x8] sm:$0xff]
    %v1022 = vld [vmem:[#allocation9 + $0x10] sm:$0xff]
    %v1023 = vld [vmem:[#allocation9 + $0x18] sm:$0xff]
    %v1024 = vld [vmem:[#allocation9 + $0x20] sm:$0xff]
    %v1025 = vld [vmem:[#allocation9 + $0x28] sm:$0xff]
    %v1026 = vld [vmem:[#allocation9 + $0x30] sm:$0xff]
    %v1027 = vld [vmem:[#allocation9 + $0x38] sm:$0xff]
    %v1028 = vld [vmem:[#allocation9 + $0x40] sm:$0xff]
    %v1029 = vld [vmem:[#allocation9 + $0x48] sm:$0xff]
    %v1030 = vld [vmem:[#allocation9 + $0x50] sm:$0xff]
    %v1031 = vld [vmem:[#allocation9 + $0x58] sm:$0xff]
    %v1032 = vld [vmem:[#allocation9 + $0x60] sm:$0xff]
    %v1033 = vld [vmem:[#allocation9 + $0x68] sm:$0xff]
    %v1034 = vld [vmem:[#allocation9 + $0x70] sm:$0xff]
    %v1035 = vld [vmem:[#allocation9 + $0x78] sm:$0xff]
    %v1036 = vld [vmem:[#allocation9 + $0x80] sm:$0xff]
    %v1037 = vld [vmem:[#allocation9 + $0x88] sm:$0xff]
    %v1038 = vld [vmem:[#allocation9 + $0x90] sm:$0xff]
    %v1039 = vld [vmem:[#allocation9 + $0x98] sm:$0xff]
    %v1040 = vld [vmem:[#allocation9 + $0xa0] sm:$0xff]
    %v1041 = vld [vmem:[#allocation9 + $0xa8] sm:$0xff]
    %v1042 = vld [vmem:[#allocation9 + $0xb0] sm:$0xff]
    %v1043 = vld [vmem:[#allocation9 + $0xb8] sm:$0xff]
    %v1044 = vld [vmem:[#allocation9 + $0xc0] sm:$0xff]
    %v1045 = vld [vmem:[#allocation9 + $0xc8] sm:$0xff]
    %v1046 = vld [vmem:[#allocation9 + $0xd0] sm:$0xff]
    %v1047 = vld [vmem:[#allocation9 + $0xd8] sm:$0xff]
    %v1048 = vld [vmem:[#allocation9 + $0xe0] sm:$0xff]
    %v1049 = vld [vmem:[#allocation9 + $0xe8] sm:$0xff]
    %v1050 = vld [vmem:[#allocation9 + $0xf0] sm:$0xff]
    %v1051 = vld [vmem:[#allocation9 + $0xf8] sm:$0xff]
    %v1052 = vld [vmem:[#allocation9 + $0x100] sm:$0xff]
    %v1053 = vld [vmem:[#allocation9 + $0x108] sm:$0xff]
    %v1054 = vld [vmem:[#allocation9 + $0x110] sm:$0xff]
    %v1055 = vld [vmem:[#allocation9 + $0x118] sm:$0xff]
    %v1056 = vld [vmem:[#allocation9 + $0x120] sm:$0xff]
    %v1057 = vld [vmem:[#allocation9 + $0x128] sm:$0xff]
    %v1058 = vld [vmem:[#allocation9 + $0x130] sm:$0xff]
    %v1059 = vld [vmem:[#allocation9 + $0x138] sm:$0xff]
    %v1060 = vld [vmem:[#allocation9 + $0x140] sm:$0xff]
    %v1061 = vld [vmem:[#allocation9 + $0x148] sm:$0xff]
    %v1062 = vld [vmem:[#allocation9 + $0x150] sm:$0xff]
    %v1063 = vld [vmem:[#allocation9 + $0x158] sm:$0xff]
    %v1064 = vld [vmem:[#allocation9 + $0x160] sm:$0xff]
    %v1065 = vld [vmem:[#allocation9 + $0x168] sm:$0xff]
    %v1066 = vld [vmem:[#allocation9 + $0x170] sm:$0xff]
    %v1067 = vld [vmem:[#allocation9 + $0x178] sm:$0xff]
    %v1068 = vld [vmem:[%s5] sm:$0x7]
    %v1070 = vlaneseq
    %v1071 = vshrl.u32 %v1070, 7
    %v1072 = vsub.s32 0, %v1071
    %v1073 = vrot.slane %v1068, %v1072
    %v1074 = vlaneseq
    %v1075 = vshrl.u32 %v1074, 7
    %v1076 = vsub.s32 1, %v1075
    %v1077 = vrot.slane %v1068, %v1076
    %v1078 = vlaneseq
    %v1079 = vshrl.u32 %v1078, 7
    %v1080 = vsub.s32 2, %v1079
    %v1081 = vrot.slane %v1068, %v1080
    %1085 = vmatprep.subr.mxu0 %v1021
    %1086 = vmatpush1.msra.mxu0 %v1020
    %1087 = vmatprep.subr.mxu0 %v1024
    %1088 = vmatpush1.msra.mxu0 %v1023
    %1089 = vmatprep.subr.mxu0 %v1027
    %1090 = vmatpush1.msra.mxu0 %v1026
    %1091 = vmatprep.subr.mxu0 %v1030
    %1092 = vmatpush1.msra.mxu0 %v1029
    %1093 = vmatprep.subr.mxu0 %v1033
    %1094 = vmatpush1.msra.mxu0 %v1032
    %1095 = vmatprep.subr.mxu0 %v1036
    %1096 = vmatpush1.msra.mxu0 %v1035
    %1097 = vmatprep.subr.mxu0 %v1039
    %1098 = vmatpush1.msra.mxu0 %v1038
    %1099 = vmatprep.subr.mxu0 %v1042
    %1100 = vmatpush1.msra.mxu0 %v1041
    %1101 = vmatprep.subr.mxu0 %v1045
    %1102 = vmatpush1.msra.mxu0 %v1044
    %1103 = vmatprep.subr.mxu0 %v1048
    %1104 = vmatpush1.msra.mxu0 %v1047
    %1105 = vmatprep.subr.mxu0 %v1051
    %1106 = vmatpush1.msra.mxu0 %v1050
    %1107 = vmatprep.subr.mxu0 %v1054
    %1108 = vmatpush1.msra.mxu0 %v1053
    %1109 = vmatprep.subr.mxu0 %v1057
    %1110 = vmatpush1.msra.mxu0 %v1056
    %1111 = vmatprep.subr.mxu0 %v1060
    %1112 = vmatpush1.msra.mxu0 %v1059
    %1113 = vmatprep.subr.mxu0 %v1063
    %1114 = vmatpush1.msra.mxu0 %v1062
    %1115 = vmatprep.subr.mxu0 %v1066
    %1116 = vmatpush1.msra.mxu0 %v1065
    %1117 = vmatprep.subr.mxu0 0.0
    %1118 = vmatpush1.msra.mxu0 0.0
    %1119 = vmatprep.subr.mxu0 0.0
    %1120 = vmatpush1.msra.mxu0 0.0
    %1121 = vmatprep.subr.mxu0 0.0
    %1122 = vmatpush1.msra.mxu0 0.0
    %1123 = vmatprep.subr.mxu0 0.0
    %1124 = vmatpush1.msra.mxu0 0.0
    %1125 = vmatprep.subr.mxu0 0.0
    %1126 = vmatpush1.msra.mxu0 0.0
    %1127 = vmatprep.subr.mxu0 0.0
    %1128 = vmatpush1.msra.mxu0 0.0
    %1129 = vmatprep.subr.mxu0 0.0
    %1130 = vmatpush1.msra.mxu0 0.0
    %1131 = vmatprep.subr.mxu0 0.0
    %1132 = vmatpush1.msra.mxu0 0.0
    %1133 = vmatprep.subr.mxu0 0.0
    %1134 = vmatpush1.msra.mxu0 0.0
    %1135 = vmatprep.subr.mxu0 0.0
    %1136 = vmatpush1.msra.mxu0 0.0
    %1137 = vmatprep.subr.mxu0 0.0
    %1138 = vmatpush1.msra.mxu0 0.0
    %1139 = vmatprep.subr.mxu0 0.0
    %1140 = vmatpush1.msra.mxu0 0.0
    %1141 = vmatprep.subr.mxu0 0.0
    %1142 = vmatpush1.msra.mxu0 0.0
    %1143 = vmatprep.subr.mxu0 0.0
    %1144 = vmatpush1.msra.mxu0 0.0
    %1145 = vmatprep.subr.mxu0 0.0
    %1146 = vmatpush1.msra.mxu0 0.0
    %1147 = vmatprep.subr.mxu0 0.0
    %1148 = vmatpush1.msra.mxu0 0.0
    %1149 = vmatprep.mubr.f32.mxu0 0.0
    %1150 = vmatmul.mubr.f32.gmra.mrb[0].mxu0 %v1018
    %v1151 = vpop.f32.mrb[0].mxu0
    %v1152 = vadd.f32 %v1073, %v1151
    %v1153 = vpop.f32.mrb[0].mxu0
    %v1154 = vadd.f32 %v1077, %v1153
    %1155 = vdwg.mxu0
    %1156 = vmatprep.subr.mxu0 0.0
    %1157 = vmatpush1.msra.mxu0 %v1022
    %1158 = vmatprep.subr.mxu0 0.0
    %1159 = vmatpush1.msra.mxu0 %v1025
    %1160 = vmatprep.subr.mxu0 0.0
    %1161 = vmatpush1.msra.mxu0 %v1028
    %1162 = vmatprep.subr.mxu0 0.0
    %1163 = vmatpush1.msra.mxu0 %v1031
    %1164 = vmatprep.subr.mxu0 0.0
    %1165 = vmatpush1.msra.mxu0 %v1034
    %1166 = vmatprep.subr.mxu0 0.0
    %1167 = vmatpush1.msra.mxu0 %v1037
    %1168 = vmatprep.subr.mxu0 0.0
    %1169 = vmatpush1.msra.mxu0 %v1040
    %1170 = vmatprep.subr.mxu0 0.0
    %1171 = vmatpush1.msra.mxu0 %v1043
    %1172 = vmatprep.subr.mxu0 0.0
    %1173 = vmatpush1.msra.mxu0 %v1046
    %1174 = vmatprep.subr.mxu0 0.0
    %1175 = vmatpush1.msra.mxu0 %v1049
    %1176 = vmatprep.subr.mxu0 0.0
    %1177 = vmatpush1.msra.mxu0 %v1052
    %1178 = vmatprep.subr.mxu0 0.0
    %1179 = vmatpush1.msra.mxu0 %v1055
    %1180 = vmatprep.subr.mxu0 0.0
    %1181 = vmatpush1.msra.mxu0 %v1058
    %1182 = vmatprep.subr.mxu0 0.0
    %1183 = vmatpush1.msra.mxu0 %v1061
    %1184 = vmatprep.subr.mxu0 0.0
    %1185 = vmatpush1.msra.mxu0 %v1064
    %1186 = vmatprep.subr.mxu0 0.0
    %1187 = vmatpush1.msra.mxu0 %v1067
    %1188 = vmatprep.subr.mxu0 0.0
    %1189 = vmatpush1.msra.mxu0 0.0
    %1190 = vmatprep.subr.mxu0 0.0
    %1191 = vmatpush1.msra.mxu0 0.0
    %1192 = vmatprep.subr.mxu0 0.0
    %1193 = vmatpush1.msra.mxu0 0.0
    %1194 = vmatprep.subr.mxu0 0.0
    %1195 = vmatpush1.msra.mxu0 0.0
    %1196 = vmatprep.subr.mxu0 0.0
    %1197 = vmatpush1.msra.mxu0 0.0
    %1198 = vmatprep.subr.mxu0 0.0
    %1199 = vmatpush1.msra.mxu0 0.0
    %1200 = vmatprep.subr.mxu0 0.0
    %1201 = vmatpush1.msra.mxu0 0.0
    %1202 = vmatprep.subr.mxu0 0.0
    %1203 = vmatpush1.msra.mxu0 0.0
    %1204 = vmatprep.subr.mxu0 0.0
    %1205 = vmatpush1.msra.mxu0 0.0
    %1206 = vmatprep.subr.mxu0 0.0
    %1207 = vmatpush1.msra.mxu0 0.0
    %1208 = vmatprep.subr.mxu0 0.0
    %1209 = vmatpush1.msra.mxu0 0.0
    %1210 = vmatprep.subr.mxu0 0.0
    %1211 = vmatpush1.msra.mxu0 0.0
    %1212 = vmatprep.subr.mxu0 0.0
    %1213 = vmatpush1.msra.mxu0 0.0
    %1214 = vmatprep.subr.mxu0 0.0
    %1215 = vmatpush1.msra.mxu0 0.0
    %1216 = vmatprep.subr.mxu0 0.0
    %1217 = vmatpush1.msra.mxu0 0.0
    %1218 = vmatprep.subr.mxu0 0.0
    %1219 = vmatpush1.msra.mxu0 0.0
    %1220 = vmatprep.mubr.f32.mxu0 0.0
    %1221 = vmatmul.mubr.f32.gmra.mrb[0].mxu0 %v1018
    %v1222 = vpop.f32.mrb[0].mxu0
    %v1223 = vadd.f32 %v1081, %v1222
    %v1224 = vpop.f32.mrb[0].mxu0
    %1225 = vdwg.mxu0
    %s1226 = scalar_lea.vmem [#allocation3], 3
    %v1227 = vld [vmem:[%s1226] ss:$8 sm:$0x7]
    %v1230 = vcombine.low %v1152, %v1154
    %v1232 = vunpack.c.l.s4 1966171168
    %v1233 = vunpack.c.0.s8 %v1232
    %v1234 = vlaneseq
    %v1235 = vshrl.u32 %v1234, 7
    %v1236 = vsub.s32 %v1233, %v1235
    %v1237 = vrot.slane %v1230, %v1236
    %v1239 = vunpack.c.l.s4 1966171168
    %v1240 = vunpack.c.0.s8 %v1239
    %v1241 = vlaneseq
    %v1242 = vshrl.u32 %v1241, 7
    %v1243 = vsub.s32 %v1240, %v1242
    %v1244 = vrot.slane %v1237, %v1243
    %v1246 = vadd.f32 %v1227, %v1244
    %v1247 = vxor.u32 %v1246, 2147483648
    %v1248 = vmul.f32 %v1247, 1.442695
    %v1249 = vpow.pop %v1248
    %v1250 = vadd.f32 %v1249, 1.0
    %v1251 = vrcp.pop %v1250
    %v1252 = vmul.f32 1.0, %v1251
    %v1253 = vmul.f32 %v1252, %v1223
    %v1255 = vrot.slane %v1227, 2
    %v1257 = vadd.f32 %v1255, %v1253
    %v1258 = vtanh.pop %v1257
    %v1260 = vrot.slane %v1252, 1
    %v1262 = vsub.f32 1.0, %v1260
    %v1263 = vmul.f32 %v1262, %v1258
    %v1264 = vmul.f32 %v1260, %v1018
    %v1265 = vadd.f32 %v1263, %v1264
    %1266 = vst [vmem:[#allocation10 + $0x3] sm:$0x1] %v1265
    %v1267 = vld [vmem:[#allocation9] sm:$0xff]
    %v1268 = vld [vmem:[#allocation9 + $0x8] sm:$0xff]
    %v1269 = vld [vmem:[#allocation9 + $0x10] sm:$0xff]
    %v1270 = vld [vmem:[#allocation9 + $0x18] sm:$0xff]
    %v1271 = vld [vmem:[#allocation9 + $0x20] sm:$0xff]
    %v1272 = vld [vmem:[#allocation9 + $0x28] sm:$0xff]
    %v1273 = vld [vmem:[#allocation9 + $0x30] sm:$0xff]
    %v1274 = vld [vmem:[#allocation9 + $0x38] sm:$0xff]
    %v1275 = vld [vmem:[#allocation9 + $0x40] sm:$0xff]
    %v1276 = vld [vmem:[#allocation9 + $0x48] sm:$0xff]
    %v1277 = vld [vmem:[#allocation9 + $0x50] sm:$0xff]
    %v1278 = vld [vmem:[#allocation9 + $0x58] sm:$0xff]
    %v1279 = vld [vmem:[#allocation9 + $0x60] sm:$0xff]
    %v1280 = vld [vmem:[#allocation9 + $0x68] sm:$0xff]
    %v1281 = vld [vmem:[#allocation9 + $0x70] sm:$0xff]
    %v1282 = vld [vmem:[#allocation9 + $0x78] sm:$0xff]
    %v1283 = vld [vmem:[#allocation9 + $0x80] sm:$0xff]
    %v1284 = vld [vmem:[#allocation9 + $0x88] sm:$0xff]
    %v1285 = vld [vmem:[#allocation9 + $0x90] sm:$0xff]
    %v1286 = vld [vmem:[#allocation9 + $0x98] sm:$0xff]
    %v1287 = vld [vmem:[#allocation9 + $0xa0] sm:$0xff]
    %v1288 = vld [vmem:[#allocation9 + $0xa8] sm:$0xff]
    %v1289 = vld [vmem:[#allocation9 + $0xb0] sm:$0xff]
    %v1290 = vld [vmem:[#allocation9 + $0xb8] sm:$0xff]
    %v1291 = vld [vmem:[#allocation9 + $0xc0] sm:$0xff]
    %v1292 = vld [vmem:[#allocation9 + $0xc8] sm:$0xff]
    %v1293 = vld [vmem:[#allocation9 + $0xd0] sm:$0xff]
    %v1294 = vld [vmem:[#allocation9 + $0xd8] sm:$0xff]
    %v1295 = vld [vmem:[#allocation9 + $0xe0] sm:$0xff]
    %v1296 = vld [vmem:[#allocation9 + $0xe8] sm:$0xff]
    %v1297 = vld [vmem:[#allocation9 + $0xf0] sm:$0xff]
    %v1298 = vld [vmem:[#allocation9 + $0xf8] sm:$0xff]
    %v1299 = vld [vmem:[#allocation9 + $0x100] sm:$0xff]
    %v1300 = vld [vmem:[#allocation9 + $0x108] sm:$0xff]
    %v1301 = vld [vmem:[#allocation9 + $0x110] sm:$0xff]
    %v1302 = vld [vmem:[#allocation9 + $0x118] sm:$0xff]
    %v1303 = vld [vmem:[#allocation9 + $0x120] sm:$0xff]
    %v1304 = vld [vmem:[#allocation9 + $0x128] sm:$0xff]
    %v1305 = vld [vmem:[#allocation9 + $0x130] sm:$0xff]
    %v1306 = vld [vmem:[#allocation9 + $0x138] sm:$0xff]
    %v1307 = vld [vmem:[#allocation9 + $0x140] sm:$0xff]
    %v1308 = vld [vmem:[#allocation9 + $0x148] sm:$0xff]
    %v1309 = vld [vmem:[#allocation9 + $0x150] sm:$0xff]
    %v1310 = vld [vmem:[#allocation9 + $0x158] sm:$0xff]
    %v1311 = vld [vmem:[#allocation9 + $0x160] sm:$0xff]
    %v1312 = vld [vmem:[#allocation9 + $0x168] sm:$0xff]
    %v1313 = vld [vmem:[#allocation9 + $0x170] sm:$0xff]
    %v1314 = vld [vmem:[#allocation9 + $0x178] sm:$0xff]
    %v1315 = vld [vmem:[%s5] sm:$0x7]
    %v1317 = vlaneseq
    %v1318 = vshrl.u32 %v1317, 7
    %v1319 = vsub.s32 0, %v1318
    %v1320 = vrot.slane %v1315, %v1319
    %v1321 = vlaneseq
    %v1322 = vshrl.u32 %v1321, 7
    %v1323 = vsub.s32 1, %v1322
    %v1324 = vrot.slane %v1315, %v1323
    %v1325 = vlaneseq
    %v1326 = vshrl.u32 %v1325, 7
    %v1327 = vsub.s32 2, %v1326
    %v1328 = vrot.slane %v1315, %v1327
    %1332 = vmatprep.subr.mxu0 %v1268
    %1333 = vmatpush1.msra.mxu0 %v1267
    %1334 = vmatprep.subr.mxu0 %v1271
    %1335 = vmatpush1.msra.mxu0 %v1270
    %1336 = vmatprep.subr.mxu0 %v1274
    %1337 = vmatpush1.msra.mxu0 %v1273
    %1338 = vmatprep.subr.mxu0 %v1277
    %1339 = vmatpush1.msra.mxu0 %v1276
    %1340 = vmatprep.subr.mxu0 %v1280
    %1341 = vmatpush1.msra.mxu0 %v1279
    %1342 = vmatprep.subr.mxu0 %v1283
    %1343 = vmatpush1.msra.mxu0 %v1282
    %1344 = vmatprep.subr.mxu0 %v1286
    %1345 = vmatpush1.msra.mxu0 %v1285
    %1346 = vmatprep.subr.mxu0 %v1289
    %1347 = vmatpush1.msra.mxu0 %v1288
    %1348 = vmatprep.subr.mxu0 %v1292
    %1349 = vmatpush1.msra.mxu0 %v1291
    %1350 = vmatprep.subr.mxu0 %v1295
    %1351 = vmatpush1.msra.mxu0 %v1294
    %1352 = vmatprep.subr.mxu0 %v1298
    %1353 = vmatpush1.msra.mxu0 %v1297
    %1354 = vmatprep.subr.mxu0 %v1301
    %1355 = vmatpush1.msra.mxu0 %v1300
    %1356 = vmatprep.subr.mxu0 %v1304
    %1357 = vmatpush1.msra.mxu0 %v1303
    %1358 = vmatprep.subr.mxu0 %v1307
    %1359 = vmatpush1.msra.mxu0 %v1306
    %1360 = vmatprep.subr.mxu0 %v1310
    %1361 = vmatpush1.msra.mxu0 %v1309
    %1362 = vmatprep.subr.mxu0 %v1313
    %1363 = vmatpush1.msra.mxu0 %v1312
    %1364 = vmatprep.subr.mxu0 0.0
    %1365 = vmatpush1.msra.mxu0 0.0
    %1366 = vmatprep.subr.mxu0 0.0
    %1367 = vmatpush1.msra.mxu0 0.0
    %1368 = vmatprep.subr.mxu0 0.0
    %1369 = vmatpush1.msra.mxu0 0.0
    %1370 = vmatprep.subr.mxu0 0.0
    %1371 = vmatpush1.msra.mxu0 0.0
    %1372 = vmatprep.subr.mxu0 0.0
    %1373 = vmatpush1.msra.mxu0 0.0
    %1374 = vmatprep.subr.mxu0 0.0
    %1375 = vmatpush1.msra.mxu0 0.0
    %1376 = vmatprep.subr.mxu0 0.0
    %1377 = vmatpush1.msra.mxu0 0.0
    %1378 = vmatprep.subr.mxu0 0.0
    %1379 = vmatpush1.msra.mxu0 0.0
    %1380 = vmatprep.subr.mxu0 0.0
    %1381 = vmatpush1.msra.mxu0 0.0
    %1382 = vmatprep.subr.mxu0 0.0
    %1383 = vmatpush1.msra.mxu0 0.0
    %1384 = vmatprep.subr.mxu0 0.0
    %1385 = vmatpush1.msra.mxu0 0.0
    %1386 = vmatprep.subr.mxu0 0.0
    %1387 = vmatpush1.msra.mxu0 0.0
    %1388 = vmatprep.subr.mxu0 0.0
    %1389 = vmatpush1.msra.mxu0 0.0
    %1390 = vmatprep.subr.mxu0 0.0
    %1391 = vmatpush1.msra.mxu0 0.0
    %1392 = vmatprep.subr.mxu0 0.0
    %1393 = vmatpush1.msra.mxu0 0.0
    %1394 = vmatprep.subr.mxu0 0.0
    %1395 = vmatpush1.msra.mxu0 0.0
    %1396 = vmatprep.mubr.f32.mxu0 0.0
    %1397 = vmatmul.mubr.f32.gmra.mrb[0].mxu0 %v1265
    %v1398 = vpop.f32.mrb[0].mxu0
    %v1399 = vadd.f32 %v1320, %v1398
    %v1400 = vpop.f32.mrb[0].mxu0
    %v1401 = vadd.f32 %v1324, %v1400
    %1402 = vdwg.mxu0
    %1403 = vmatprep.subr.mxu0 0.0
    %1404 = vmatpush1.msra.mxu0 %v1269
    %1405 = vmatprep.subr.mxu0 0.0
    %1406 = vmatpush1.msra.mxu0 %v1272
    %1407 = vmatprep.subr.mxu0 0.0
    %1408 = vmatpush1.msra.mxu0 %v1275
    %1409 = vmatprep.subr.mxu0 0.0
    %1410 = vmatpush1.msra.mxu0 %v1278
    %1411 = vmatprep.subr.mxu0 0.0
    %1412 = vmatpush1.msra.mxu0 %v1281
    %1413 = vmatprep.subr.mxu0 0.0
    %1414 = vmatpush1.msra.mxu0 %v1284
    %1415 = vmatprep.subr.mxu0 0.0
    %1416 = vmatpush1.msra.mxu0 %v1287
    %1417 = vmatprep.subr.mxu0 0.0
    %1418 = vmatpush1.msra.mxu0 %v1290
    %1419 = vmatprep.subr.mxu0 0.0
    %1420 = vmatpush1.msra.mxu0 %v1293
    %1421 = vmatprep.subr.mxu0 0.0
    %1422 = vmatpush1.msra.mxu0 %v1296
    %1423 = vmatprep.subr.mxu0 0.0
    %1424 = vmatpush1.msra.mxu0 %v1299
    %1425 = vmatprep.subr.mxu0 0.0
    %1426 = vmatpush1.msra.mxu0 %v1302
    %1427 = vmatprep.subr.mxu0 0.0
    %1428 = vmatpush1.msra.mxu0 %v1305
    %1429 = vmatprep.subr.mxu0 0.0
    %1430 = vmatpush1.msra.mxu0 %v1308
    %1431 = vmatprep.subr.mxu0 0.0
    %1432 = vmatpush1.msra.mxu0 %v1311
    %1433 = vmatprep.subr.mxu0 0.0
    %1434 = vmatpush1.msra.mxu0 %v1314
    %1435 = vmatprep.subr.mxu0 0.0
    %1436 = vmatpush1.msra.mxu0 0.0
    %1437 = vmatprep.subr.mxu0 0.0
    %1438 = vmatpush1.msra.mxu0 0.0
    %1439 = vmatprep.subr.mxu0 0.0
    %1440 = vmatpush1.msra.mxu0 0.0
    %1441 = vmatprep.subr.mxu0 0.0
    %1442 = vmatpush1.msra.mxu0 0.0
    %1443 = vmatprep.subr.mxu0 0.0
    %1444 = vmatpush1.msra.mxu0 0.0
    %1445 = vmatprep.subr.mxu0 0.0
    %1446 = vmatpush1.msra.mxu0 0.0
    %1447 = vmatprep.subr.mxu0 0.0
    %1448 = vmatpush1.msra.mxu0 0.0
    %1449 = vmatprep.subr.mxu0 0.0
    %1450 = vmatpush1.msra.mxu0 0.0
    %1451 = vmatprep.subr.mxu0 0.0
    %1452 = vmatpush1.msra.mxu0 0.0
    %1453 = vmatprep.subr.mxu0 0.0
    %1454 = vmatpush1.msra.mxu0 0.0
    %1455 = vmatprep.subr.mxu0 0.0
    %1456 = vmatpush1.msra.mxu0 0.0
    %1457 = vmatprep.subr.mxu0 0.0
    %1458 = vmatpush1.msra.mxu0 0.0
    %1459 = vmatprep.subr.mxu0 0.0
    %1460 = vmatpush1.msra.mxu0 0.0
    %1461 = vmatprep.subr.mxu0 0.0
    %1462 = vmatpush1.msra.mxu0 0.0
    %1463 = vmatprep.subr.mxu0 0.0
    %1464 = vmatpush1.msra.mxu0 0.0
    %1465 = vmatprep.subr.mxu0 0.0
    %1466 = vmatpush1.msra.mxu0 0.0
    %1467 = vmatprep.mubr.f32.mxu0 0.0
    %1468 = vmatmul.mubr.f32.gmra.mrb[0].mxu0 %v1265
    %v1469 = vpop.f32.mrb[0].mxu0
    %v1470 = vadd.f32 %v1328, %v1469
    %v1471 = vpop.f32.mrb[0].mxu0
    %1472 = vdwg.mxu0
    %s1473 = scalar_lea.vmem [#allocation3], 4
    %v1474 = vld [vmem:[%s1473] ss:$8 sm:$0x7]
    %v1477 = vcombine.low %v1399, %v1401
    %v1479 = vunpack.c.l.s4 1966171168
    %v1480 = vunpack.c.0.s8 %v1479
    %v1481 = vlaneseq
    %v1482 = vshrl.u32 %v1481, 7
    %v1483 = vsub.s32 %v1480, %v1482
    %v1484 = vrot.slane %v1477, %v1483
    %v1486 = vunpack.c.l.s4 1966171168
    %v1487 = vunpack.c.0.s8 %v1486
    %v1488 = vlaneseq
    %v1489 = vshrl.u32 %v1488, 7
    %v1490 = vsub.s32 %v1487, %v1489
    %v1491 = vrot.slane %v1484, %v1490
    %v1493 = vadd.f32 %v1474, %v1491
    %v1494 = vxor.u32 %v1493, 2147483648
    %v1495 = vmul.f32 %v1494, 1.442695
    %v1496 = vpow.pop %v1495
    %v1497 = vadd.f32 %v1496, 1.0
    %v1498 = vrcp.pop %v1497
    %v1499 = vmul.f32 1.0, %v1498
    %v1500 = vmul.f32 %v1499, %v1470
    %v1502 = vrot.slane %v1474, 2
    %v1504 = vadd.f32 %v1502, %v1500
    %v1505 = vtanh.pop %v1504
    %v1507 = vrot.slane %v1499, 1
    %v1509 = vsub.f32 1.0, %v1507
    %v1510 = vmul.f32 %v1509, %v1505
    %v1511 = vmul.f32 %v1507, %v1265
    %v1512 = vadd.f32 %v1510, %v1511
    %1513 = vst [vmem:[#allocation10 + $0x4] sm:$0x1] %v1512
    %v1514 = vld [vmem:[#allocation9] sm:$0xff]
    %v1515 = vld [vmem:[#allocation9 + $0x8] sm:$0xff]
    %v1516 = vld [vmem:[#allocation9 + $0x10] sm:$0xff]
    %v1517 = vld [vmem:[#allocation9 + $0x18] sm:$0xff]
    %v1518 = vld [vmem:[#allocation9 + $0x20] sm:$0xff]
    %v1519 = vld [vmem:[#allocation9 + $0x28] sm:$0xff]
    %v1520 = vld [vmem:[#allocation9 + $0x30] sm:$0xff]
    %v1521 = vld [vmem:[#allocation9 + $0x38] sm:$0xff]
    %v1522 = vld [vmem:[#allocation9 + $0x40] sm:$0xff]
    %v1523 = vld [vmem:[#allocation9 + $0x48] sm:$0xff]
    %v1524 = vld [vmem:[#allocation9 + $0x50] sm:$0xff]
    %v1525 = vld [vmem:[#allocation9 + $0x58] sm:$0xff]
    %v1526 = vld [vmem:[#allocation9 + $0x60] sm:$0xff]
    %v1527 = vld [vmem:[#allocation9 + $0x68] sm:$0xff]
    %v1528 = vld [vmem:[#allocation9 + $0x70] sm:$0xff]
    %v1529 = vld [vmem:[#allocation9 + $0x78] sm:$0xff]
    %v1530 = vld [vmem:[#allocation9 + $0x80] sm:$0xff]
    %v1531 = vld [vmem:[#allocation9 + $0x88] sm:$0xff]
    %v1532 = vld [vmem:[#allocation9 + $0x90] sm:$0xff]
    %v1533 = vld [vmem:[#allocation9 + $0x98] sm:$0xff]
    %v1534 = vld [vmem:[#allocation9 + $0xa0] sm:$0xff]
    %v1535 = vld [vmem:[#allocation9 + $0xa8] sm:$0xff]
    %v1536 = vld [vmem:[#allocation9 + $0xb0] sm:$0xff]
    %v1537 = vld [vmem:[#allocation9 + $0xb8] sm:$0xff]
    %v1538 = vld [vmem:[#allocation9 + $0xc0] sm:$0xff]
    %v1539 = vld [vmem:[#allocation9 + $0xc8] sm:$0xff]
    %v1540 = vld [vmem:[#allocation9 + $0xd0] sm:$0xff]
    %v1541 = vld [vmem:[#allocation9 + $0xd8] sm:$0xff]
    %v1542 = vld [vmem:[#allocation9 + $0xe0] sm:$0xff]
    %v1543 = vld [vmem:[#allocation9 + $0xe8] sm:$0xff]
    %v1544 = vld [vmem:[#allocation9 + $0xf0] sm:$0xff]
    %v1545 = vld [vmem:[#allocation9 + $0xf8] sm:$0xff]
    %v1546 = vld [vmem:[#allocation9 + $0x100] sm:$0xff]
    %v1547 = vld [vmem:[#allocation9 + $0x108] sm:$0xff]
    %v1548 = vld [vmem:[#allocation9 + $0x110] sm:$0xff]
    %v1549 = vld [vmem:[#allocation9 + $0x118] sm:$0xff]
    %v1550 = vld [vmem:[#allocation9 + $0x120] sm:$0xff]
    %v1551 = vld [vmem:[#allocation9 + $0x128] sm:$0xff]
    %v1552 = vld [vmem:[#allocation9 + $0x130] sm:$0xff]
    %v1553 = vld [vmem:[#allocation9 + $0x138] sm:$0xff]
    %v1554 = vld [vmem:[#allocation9 + $0x140] sm:$0xff]
    %v1555 = vld [vmem:[#allocation9 + $0x148] sm:$0xff]
    %v1556 = vld [vmem:[#allocation9 + $0x150] sm:$0xff]
    %v1557 = vld [vmem:[#allocation9 + $0x158] sm:$0xff]
    %v1558 = vld [vmem:[#allocation9 + $0x160] sm:$0xff]
    %v1559 = vld [vmem:[#allocation9 + $0x168] sm:$0xff]
    %v1560 = vld [vmem:[#allocation9 + $0x170] sm:$0xff]
    %v1561 = vld [vmem:[#allocation9 + $0x178] sm:$0xff]
    %v1562 = vld [vmem:[%s5] sm:$0x7]
    %v1564 = vlaneseq
    %v1565 = vshrl.u32 %v1564, 7
    %v1566 = vsub.s32 0, %v1565
    %v1567 = vrot.slane %v1562, %v1566
    %v1568 = vlaneseq
    %v1569 = vshrl.u32 %v1568, 7
    %v1570 = vsub.s32 1, %v1569
    %v1571 = vrot.slane %v1562, %v1570
    %v1572 = vlaneseq
    %v1573 = vshrl.u32 %v1572, 7
    %v1574 = vsub.s32 2, %v1573
    %v1575 = vrot.slane %v1562, %v1574
    %1579 = vmatprep.subr.mxu0 %v1515
    %1580 = vmatpush1.msra.mxu0 %v1514
    %1581 = vmatprep.subr.mxu0 %v1518
    %1582 = vmatpush1.msra.mxu0 %v1517
    %1583 = vmatprep.subr.mxu0 %v1521
    %1584 = vmatpush1.msra.mxu0 %v1520
    %1585 = vmatprep.subr.mxu0 %v1524
    %1586 = vmatpush1.msra.mxu0 %v1523
    %1587 = vmatprep.subr.mxu0 %v1527
    %1588 = vmatpush1.msra.mxu0 %v1526
    %1589 = vmatprep.subr.mxu0 %v1530
    %1590 = vmatpush1.msra.mxu0 %v1529
    %1591 = vmatprep.subr.mxu0 %v1533
    %1592 = vmatpush1.msra.mxu0 %v1532
    %1593 = vmatprep.subr.mxu0 %v1536
    %1594 = vmatpush1.msra.mxu0 %v1535
    %1595 = vmatprep.subr.mxu0 %v1539
    %1596 = vmatpush1.msra.mxu0 %v1538
    %1597 = vmatprep.subr.mxu0 %v1542
    %1598 = vmatpush1.msra.mxu0 %v1541
    %1599 = vmatprep.subr.mxu0 %v1545
    %1600 = vmatpush1.msra.mxu0 %v1544
    %1601 = vmatprep.subr.mxu0 %v1548
    %1602 = vmatpush1.msra.mxu0 %v1547
    %1603 = vmatprep.subr.mxu0 %v1551
    %1604 = vmatpush1.msra.mxu0 %v1550
    %1605 = vmatprep.subr.mxu0 %v1554
    %1606 = vmatpush1.msra.mxu0 %v1553
    %1607 = vmatprep.subr.mxu0 %v1557
    %1608 = vmatpush1.msra.mxu0 %v1556
    %1609 = vmatprep.subr.mxu0 %v1560
    %1610 = vmatpush1.msra.mxu0 %v1559
    %1611 = vmatprep.subr.mxu0 0.0
    %1612 = vmatpush1.msra.mxu0 0.0
    %1613 = vmatprep.subr.mxu0 0.0
    %1614 = vmatpush1.msra.mxu0 0.0
    %1615 = vmatprep.subr.mxu0 0.0
    %1616 = vmatpush1.msra.mxu0 0.0
    %1617 = vmatprep.subr.mxu0 0.0
    %1618 = vmatpush1.msra.mxu0 0.0
    %1619 = vmatprep.subr.mxu0 0.0
    %1620 = vmatpush1.msra.mxu0 0.0
    %1621 = vmatprep.subr.mxu0 0.0
    %1622 = vmatpush1.msra.mxu0 0.0
    %1623 = vmatprep.subr.mxu0 0.0
    %1624 = vmatpush1.msra.mxu0 0.0
    %1625 = vmatprep.subr.mxu0 0.0
    %1626 = vmatpush1.msra.mxu0 0.0
    %1627 = vmatprep.subr.mxu0 0.0
    %1628 = vmatpush1.msra.mxu0 0.0
    %1629 = vmatprep.subr.mxu0 0.0
    %1630 = vmatpush1.msra.mxu0 0.0
    %1631 = vmatprep.subr.mxu0 0.0
    %1632 = vmatpush1.msra.mxu0 0.0
    %1633 = vmatprep.subr.mxu0 0.0
    %1634 = vmatpush1.msra.mxu0 0.0
    %1635 = vmatprep.subr.mxu0 0.0
    %1636 = vmatpush1.msra.mxu0 0.0
    %1637 = vmatprep.subr.mxu0 0.0
    %1638 = vmatpush1.msra.mxu0 0.0
    %1639 = vmatprep.subr.mxu0 0.0
    %1640 = vmatpush1.msra.mxu0 0.0
    %1641 = vmatprep.subr.mxu0 0.0
    %1642 = vmatpush1.msra.mxu0 0.0
    %1643 = vmatprep.mubr.f32.mxu0 0.0
    %1644 = vmatmul.mubr.f32.gmra.mrb[0].mxu0 %v1512
    %v1645 = vpop.f32.mrb[0].mxu0
    %v1646 = vadd.f32 %v1567, %v1645
    %v1647 = vpop.f32.mrb[0].mxu0
    %v1648 = vadd.f32 %v1571, %v1647
    %1649 = vdwg.mxu0
    %1650 = vmatprep.subr.mxu0 0.0
    %1651 = vmatpush1.msra.mxu0 %v1516
    %1652 = vmatprep.subr.mxu0 0.0
    %1653 = vmatpush1.msra.mxu0 %v1519
    %1654 = vmatprep.subr.mxu0 0.0
    %1655 = vmatpush1.msra.mxu0 %v1522
    %1656 = vmatprep.subr.mxu0 0.0
    %1657 = vmatpush1.msra.mxu0 %v1525
    %1658 = vmatprep.subr.mxu0 0.0
    %1659 = vmatpush1.msra.mxu0 %v1528
    %1660 = vmatprep.subr.mxu0 0.0
    %1661 = vmatpush1.msra.mxu0 %v1531
    %1662 = vmatprep.subr.mxu0 0.0
    %1663 = vmatpush1.msra.mxu0 %v1534
    %1664 = vmatprep.subr.mxu0 0.0
    %1665 = vmatpush1.msra.mxu0 %v1537
    %1666 = vmatprep.subr.mxu0 0.0
    %1667 = vmatpush1.msra.mxu0 %v1540
    %1668 = vmatprep.subr.mxu0 0.0
    %1669 = vmatpush1.msra.mxu0 %v1543
    %1670 = vmatprep.subr.mxu0 0.0
    %1671 = vmatpush1.msra.mxu0 %v1546
    %1672 = vmatprep.subr.mxu0 0.0
    %1673 = vmatpush1.msra.mxu0 %v1549
    %1674 = vmatprep.subr.mxu0 0.0
    %1675 = vmatpush1.msra.mxu0 %v1552
    %1676 = vmatprep.subr.mxu0 0.0
    %1677 = vmatpush1.msra.mxu0 %v1555
    %1678 = vmatprep.subr.mxu0 0.0
    %1679 = vmatpush1.msra.mxu0 %v1558
    %1680 = vmatprep.subr.mxu0 0.0
    %1681 = vmatpush1.msra.mxu0 %v1561
    %1682 = vmatprep.subr.mxu0 0.0
    %1683 = vmatpush1.msra.mxu0 0.0
    %1684 = vmatprep.subr.mxu0 0.0
    %1685 = vmatpush1.msra.mxu0 0.0
    %1686 = vmatprep.subr.mxu0 0.0
    %1687 = vmatpush1.msra.mxu0 0.0
    %1688 = vmatprep.subr.mxu0 0.0
    %1689 = vmatpush1.msra.mxu0 0.0
    %1690 = vmatprep.subr.mxu0 0.0
    %1691 = vmatpush1.msra.mxu0 0.0
    %1692 = vmatprep.subr.mxu0 0.0
    %1693 = vmatpush1.msra.mxu0 0.0
    %1694 = vmatprep.subr.mxu0 0.0
    %1695 = vmatpush1.msra.mxu0 0.0
    %1696 = vmatprep.subr.mxu0 0.0
    %1697 = vmatpush1.msra.mxu0 0.0
    %1698 = vmatprep.subr.mxu0 0.0
    %1699 = vmatpush1.msra.mxu0 0.0
    %1700 = vmatprep.subr.mxu0 0.0
    %1701 = vmatpush1.msra.mxu0 0.0
    %1702 = vmatprep.subr.mxu0 0.0
    %1703 = vmatpush1.msra.mxu0 0.0
    %1704 = vmatprep.subr.mxu0 0.0
    %1705 = vmatpush1.msra.mxu0 0.0
    %1706 = vmatprep.subr.mxu0 0.0
    %1707 = vmatpush1.msra.mxu0 0.0
    %1708 = vmatprep.subr.mxu0 0.0
    %1709 = vmatpush1.msra.mxu0 0.0
    %1710 = vmatprep.subr.mxu0 0.0
    %1711 = vmatpush1.msra.mxu0 0.0
    %1712 = vmatprep.subr.mxu0 0.0
    %1713 = vmatpush1.msra.mxu0 0.0
    %1714 = vmatprep.mubr.f32.mxu0 0.0
    %1715 = vmatmul.mubr.f32.gmra.mrb[0].mxu0 %v1512
    %v1716 = vpop.f32.mrb[0].mxu0
    %v1717 = vadd.f32 %v1575, %v1716
    %v1718 = vpop.f32.mrb[0].mxu0
    %1719 = vdwg.mxu0
    %s1720 = scalar_lea.vmem [#allocation3], 5
    %v1721 = vld [vmem:[%s1720] ss:$8 sm:$0x7]
    %v1724 = vcombine.low %v1646, %v1648
    %v1726 = vunpack.c.l.s4 1966171168
    %v1727 = vunpack.c.0.s8 %v1726
    %v1728 = vlaneseq
    %v1729 = vshrl.u32 %v1728, 7
    %v1730 = vsub.s32 %v1727, %v1729
    %v1731 = vrot.slane %v1724, %v1730
    %v1733 = vunpack.c.l.s4 1966171168
    %v1734 = vunpack.c.0.s8 %v1733
    %v1735 = vlaneseq
    %v1736 = vshrl.u32 %v1735, 7
    %v1737 = vsub.s32 %v1734, %v1736
    %v1738 = vrot.slane %v1731, %v1737
    %v1740 = vadd.f32 %v1721, %v1738
    %v1741 = vxor.u32 %v1740, 2147483648
    %v1742 = vmul.f32 %v1741, 1.442695
    %v1743 = vpow.pop %v1742
    %v1744 = vadd.f32 %v1743, 1.0
    %v1745 = vrcp.pop %v1744
    %v1746 = vmul.f32 1.0, %v1745
    %v1747 = vmul.f32 %v1746, %v1717
    %v1749 = vrot.slane %v1721, 2
    %v1751 = vadd.f32 %v1749, %v1747
    %v1752 = vtanh.pop %v1751
    %v1754 = vrot.slane %v1746, 1
    %v1756 = vsub.f32 1.0, %v1754
    %v1757 = vmul.f32 %v1756, %v1752
    %v1758 = vmul.f32 %v1754, %v1512
    %v1759 = vadd.f32 %v1757, %v1758
    %1760 = vst [vmem:[#allocation10 + $0x5] sm:$0x1] %v1759
    %v1761 = vld [vmem:[#allocation9] sm:$0xff]
    %v1762 = vld [vmem:[#allocation9 + $0x8] sm:$0xff]
    %v1763 = vld [vmem:[#allocation9 + $0x10] sm:$0xff]
    %v1764 = vld [vmem:[#allocation9 + $0x18] sm:$0xff]
    %v1765 = vld [vmem:[#allocation9 + $0x20] sm:$0xff]
    %v1766 = vld [vmem:[#allocation9 + $0x28] sm:$0xff]
    %v1767 = vld [vmem:[#allocation9 + $0x30] sm:$0xff]
    %v1768 = vld [vmem:[#allocation9 + $0x38] sm:$0xff]
    %v1769 = vld [vmem:[#allocation9 + $0x40] sm:$0xff]
    %v1770 = vld [vmem:[#allocation9 + $0x48] sm:$0xff]
    %v1771 = vld [vmem:[#allocation9 + $0x50] sm:$0xff]
    %v1772 = vld [vmem:[#allocation9 + $0x58] sm:$0xff]
    %v1773 = vld [vmem:[#allocation9 + $0x60] sm:$0xff]
    %v1774 = vld [vmem:[#allocation9 + $0x68] sm:$0xff]
    %v1775 = vld [vmem:[#allocation9 + $0x70] sm:$0xff]
    %v1776 = vld [vmem:[#allocation9 + $0x78] sm:$0xff]
    %v1777 = vld [vmem:[#allocation9 + $0x80] sm:$0xff]
    %v1778 = vld [vmem:[#allocation9 + $0x88] sm:$0xff]
    %v1779 = vld [vmem:[#allocation9 + $0x90] sm:$0xff]
    %v1780 = vld [vmem:[#allocation9 + $0x98] sm:$0xff]
    %v1781 = vld [vmem:[#allocation9 + $0xa0] sm:$0xff]
    %v1782 = vld [vmem:[#allocation9 + $0xa8] sm:$0xff]
    %v1783 = vld [vmem:[#allocation9 + $0xb0] sm:$0xff]
    %v1784 = vld [vmem:[#allocation9 + $0xb8] sm:$0xff]
    %v1785 = vld [vmem:[#allocation9 + $0xc0] sm:$0xff]
    %v1786 = vld [vmem:[#allocation9 + $0xc8] sm:$0xff]
    %v1787 = vld [vmem:[#allocation9 + $0xd0] sm:$0xff]
    %v1788 = vld [vmem:[#allocation9 + $0xd8] sm:$0xff]
    %v1789 = vld [vmem:[#allocation9 + $0xe0] sm:$0xff]
    %v1790 = vld [vmem:[#allocation9 + $0xe8] sm:$0xff]
    %v1791 = vld [vmem:[#allocation9 + $0xf0] sm:$0xff]
    %v1792 = vld [vmem:[#allocation9 + $0xf8] sm:$0xff]
    %v1793 = vld [vmem:[#allocation9 + $0x100] sm:$0xff]
    %v1794 = vld [vmem:[#allocation9 + $0x108] sm:$0xff]
    %v1795 = vld [vmem:[#allocation9 + $0x110] sm:$0xff]
    %v1796 = vld [vmem:[#allocation9 + $0x118] sm:$0xff]
    %v1797 = vld [vmem:[#allocation9 + $0x120] sm:$0xff]
    %v1798 = vld [vmem:[#allocation9 + $0x128] sm:$0xff]
    %v1799 = vld [vmem:[#allocation9 + $0x130] sm:$0xff]
    %v1800 = vld [vmem:[#allocation9 + $0x138] sm:$0xff]
    %v1801 = vld [vmem:[#allocation9 + $0x140] sm:$0xff]
    %v1802 = vld [vmem:[#allocation9 + $0x148] sm:$0xff]
    %v1803 = vld [vmem:[#allocation9 + $0x150] sm:$0xff]
    %v1804 = vld [vmem:[#allocation9 + $0x158] sm:$0xff]
    %v1805 = vld [vmem:[#allocation9 + $0x160] sm:$0xff]
    %v1806 = vld [vmem:[#allocation9 + $0x168] sm:$0xff]
    %v1807 = vld [vmem:[#allocation9 + $0x170] sm:$0xff]
    %v1808 = vld [vmem:[#allocation9 + $0x178] sm:$0xff]
    %v1809 = vld [vmem:[%s5] sm:$0x7]
    %v1811 = vlaneseq
    %v1812 = vshrl.u32 %v1811, 7
    %v1813 = vsub.s32 0, %v1812
    %v1814 = vrot.slane %v1809, %v1813
    %v1815 = vlaneseq
    %v1816 = vshrl.u32 %v1815, 7
    %v1817 = vsub.s32 1, %v1816
    %v1818 = vrot.slane %v1809, %v1817
    %v1819 = vlaneseq
    %v1820 = vshrl.u32 %v1819, 7
    %v1821 = vsub.s32 2, %v1820
    %v1822 = vrot.slane %v1809, %v1821
    %1826 = vmatprep.subr.mxu0 %v1762
    %1827 = vmatpush1.msra.mxu0 %v1761
    %1828 = vmatprep.subr.mxu0 %v1765
    %1829 = vmatpush1.msra.mxu0 %v1764
    %1830 = vmatprep.subr.mxu0 %v1768
    %1831 = vmatpush1.msra.mxu0 %v1767
    %1832 = vmatprep.subr.mxu0 %v1771
    %1833 = vmatpush1.msra.mxu0 %v1770
    %1834 = vmatprep.subr.mxu0 %v1774
    %1835 = vmatpush1.msra.mxu0 %v1773
    %1836 = vmatprep.subr.mxu0 %v1777
    %1837 = vmatpush1.msra.mxu0 %v1776
    %1838 = vmatprep.subr.mxu0 %v1780
    %1839 = vmatpush1.msra.mxu0 %v1779
    %1840 = vmatprep.subr.mxu0 %v1783
    %1841 = vmatpush1.msra.mxu0 %v1782
    %1842 = vmatprep.subr.mxu0 %v1786
    %1843 = vmatpush1.msra.mxu0 %v1785
    %1844 = vmatprep.subr.mxu0 %v1789
    %1845 = vmatpush1.msra.mxu0 %v1788
    %1846 = vmatprep.subr.mxu0 %v1792
    %1847 = vmatpush1.msra.mxu0 %v1791
    %1848 = vmatprep.subr.mxu0 %v1795
    %1849 = vmatpush1.msra.mxu0 %v1794
    %1850 = vmatprep.subr.mxu0 %v1798
    %1851 = vmatpush1.msra.mxu0 %v1797
    %1852 = vmatprep.subr.mxu0 %v1801
    %1853 = vmatpush1.msra.mxu0 %v1800
    %1854 = vmatprep.subr.mxu0 %v1804
    %1855 = vmatpush1.msra.mxu0 %v1803
    %1856 = vmatprep.subr.mxu0 %v1807
    %1857 = vmatpush1.msra.mxu0 %v1806
    %1858 = vmatprep.subr.mxu0 0.0
    %1859 = vmatpush1.msra.mxu0 0.0
    %1860 = vmatprep.subr.mxu0 0.0
    %1861 = vmatpush1.msra.mxu0 0.0
    %1862 = vmatprep.subr.mxu0 0.0
    %1863 = vmatpush1.msra.mxu0 0.0
    %1864 = vmatprep.subr.mxu0 0.0
    %1865 = vmatpush1.msra.mxu0 0.0
    %1866 = vmatprep.subr.mxu0 0.0
    %1867 = vmatpush1.msra.mxu0 0.0
    %1868 = vmatprep.subr.mxu0 0.0
    %1869 = vmatpush1.msra.mxu0 0.0
    %1870 = vmatprep.subr.mxu0 0.0
    %1871 = vmatpush1.msra.mxu0 0.0
    %1872 = vmatprep.subr.mxu0 0.0
    %1873 = vmatpush1.msra.mxu0 0.0
    %1874 = vmatprep.subr.mxu0 0.0
    %1875 = vmatpush1.msra.mxu0 0.0
    %1876 = vmatprep.subr.mxu0 0.0
    %1877 = vmatpush1.msra.mxu0 0.0
    %1878 = vmatprep.subr.mxu0 0.0
    %1879 = vmatpush1.msra.mxu0 0.0
    %1880 = vmatprep.subr.mxu0 0.0
    %1881 = vmatpush1.msra.mxu0 0.0
    %1882 = vmatprep.subr.mxu0 0.0
    %1883 = vmatpush1.msra.mxu0 0.0
    %1884 = vmatprep.subr.mxu0 0.0
    %1885 = vmatpush1.msra.mxu0 0.0
    %1886 = vmatprep.subr.mxu0 0.0
    %1887 = vmatpush1.msra.mxu0 0.0
    %1888 = vmatprep.subr.mxu0 0.0
    %1889 = vmatpush1.msra.mxu0 0.0
    %1890 = vmatprep.mubr.f32.mxu0 0.0
    %1891 = vmatmul.mubr.f32.gmra.mrb[0].mxu0 %v1759
    %v1892 = vpop.f32.mrb[0].mxu0
    %v1893 = vadd.f32 %v1814, %v1892
    %v1894 = vpop.f32.mrb[0].mxu0
    %v1895 = vadd.f32 %v1818, %v1894
    %1896 = vdwg.mxu0
    %1897 = vmatprep.subr.mxu0 0.0
    %1898 = vmatpush1.msra.mxu0 %v1763
    %1899 = vmatprep.subr.mxu0 0.0
    %1900 = vmatpush1.msra.mxu0 %v1766
    %1901 = vmatprep.subr.mxu0 0.0
    %1902 = vmatpush1.msra.mxu0 %v1769
    %1903 = vmatprep.subr.mxu0 0.0
    %1904 = vmatpush1.msra.mxu0 %v1772
    %1905 = vmatprep.subr.mxu0 0.0
    %1906 = vmatpush1.msra.mxu0 %v1775
    %1907 = vmatprep.subr.mxu0 0.0
    %1908 = vmatpush1.msra.mxu0 %v1778
    %1909 = vmatprep.subr.mxu0 0.0
    %1910 = vmatpush1.msra.mxu0 %v1781
    %1911 = vmatprep.subr.mxu0 0.0
    %1912 = vmatpush1.msra.mxu0 %v1784
    %1913 = vmatprep.subr.mxu0 0.0
    %1914 = vmatpush1.msra.mxu0 %v1787
    %1915 = vmatprep.subr.mxu0 0.0
    %1916 = vmatpush1.msra.mxu0 %v1790
    %1917 = vmatprep.subr.mxu0 0.0
    %1918 = vmatpush1.msra.mxu0 %v1793
    %1919 = vmatprep.subr.mxu0 0.0
    %1920 = vmatpush1.msra.mxu0 %v1796
    %1921 = vmatprep.subr.mxu0 0.0
    %1922 = vmatpush1.msra.mxu0 %v1799
    %1923 = vmatprep.subr.mxu0 0.0
    %1924 = vmatpush1.msra.mxu0 %v1802
    %1925 = vmatprep.subr.mxu0 0.0
    %1926 = vmatpush1.msra.mxu0 %v1805
    %1927 = vmatprep.subr.mxu0 0.0
    %1928 = vmatpush1.msra.mxu0 %v1808
    %1929 = vmatprep.subr.mxu0 0.0
    %1930 = vmatpush1.msra.mxu0 0.0
    %1931 = vmatprep.subr.mxu0 0.0
    %1932 = vmatpush1.msra.mxu0 0.0
    %1933 = vmatprep.subr.mxu0 0.0
    %1934 = vmatpush1.msra.mxu0 0.0
    %1935 = vmatprep.subr.mxu0 0.0
    %1936 = vmatpush1.msra.mxu0 0.0
    %1937 = vmatprep.subr.mxu0 0.0
    %1938 = vmatpush1.msra.mxu0 0.0
    %1939 = vmatprep.subr.mxu0 0.0
    %1940 = vmatpush1.msra.mxu0 0.0
    %1941 = vmatprep.subr.mxu0 0.0
    %1942 = vmatpush1.msra.mxu0 0.0
    %1943 = vmatprep.subr.mxu0 0.0
    %1944 = vmatpush1.msra.mxu0 0.0
    %1945 = vmatprep.subr.mxu0 0.0
    %1946 = vmatpush1.msra.mxu0 0.0
    %1947 = vmatprep.subr.mxu0 0.0
    %1948 = vmatpush1.msra.mxu0 0.0
    %1949 = vmatprep.subr.mxu0 0.0
    %1950 = vmatpush1.msra.mxu0 0.0
    %1951 = vmatprep.subr.mxu0 0.0
    %1952 = vmatpush1.msra.mxu0 0.0
    %1953 = vmatprep.subr.mxu0 0.0
    %1954 = vmatpush1.msra.mxu0 0.0
    %1955 = vmatprep.subr.mxu0 0.0
    %1956 = vmatpush1.msra.mxu0 0.0
    %1957 = vmatprep.subr.mxu0 0.0
    %1958 = vmatpush1.msra.mxu0 0.0
    %1959 = vmatprep.subr.mxu0 0.0
    %1960 = vmatpush1.msra.mxu0 0.0
    %1961 = vmatprep.mubr.f32.mxu0 0.0
    %1962 = vmatmul.mubr.f32.gmra.mrb[0].mxu0 %v1759
    %v1963 = vpop.f32.mrb[0].mxu0
    %v1964 = vadd.f32 %v1822, %v1963
    %v1965 = vpop.f32.mrb[0].mxu0
    %1966 = vdwg.mxu0
    %s1967 = scalar_lea.vmem [#allocation3], 6
    %v1968 = vld [vmem:[%s1967] ss:$8 sm:$0x7]
    %v1971 = vcombine.low %v1893, %v1895
    %v1973 = vunpack.c.l.s4 1966171168
    %v1974 = vunpack.c.0.s8 %v1973
    %v1975 = vlaneseq
    %v1976 = vshrl.u32 %v1975, 7
    %v1977 = vsub.s32 %v1974, %v1976
    %v1978 = vrot.slane %v1971, %v1977
    %v1980 = vunpack.c.l.s4 1966171168
    %v1981 = vunpack.c.0.s8 %v1980
    %v1982 = vlaneseq
    %v1983 = vshrl.u32 %v1982, 7
    %v1984 = vsub.s32 %v1981, %v1983
    %v1985 = vrot.slane %v1978, %v1984
    %v1987 = vadd.f32 %v1968, %v1985
    %v1988 = vxor.u32 %v1987, 2147483648
    %v1989 = vmul.f32 %v1988, 1.442695
    %v1990 = vpow.pop %v1989
    %v1991 = vadd.f32 %v1990, 1.0
    %v1992 = vrcp.pop %v1991
    %v1993 = vmul.f32 1.0, %v1992
    %v1994 = vmul.f32 %v1993, %v1964
    %v1996 = vrot.slane %v1968, 2
    %v1998 = vadd.f32 %v1996, %v1994
    %v1999 = vtanh.pop %v1998
    %v2001 = vrot.slane %v1993, 1
    %v2003 = vsub.f32 1.0, %v2001
    %v2004 = vmul.f32 %v2003, %v1999
    %v2005 = vmul.f32 %v2001, %v1759
    %v2006 = vadd.f32 %v2004, %v2005
    %2007 = vst [vmem:[#allocation10 + $0x6] sm:$0x1] %v2006
    %v2008 = vld [vmem:[#allocation9] sm:$0xff]
    %v2009 = vld [vmem:[#allocation9 + $0x8] sm:$0xff]
    %v2010 = vld [vmem:[#allocation9 + $0x10] sm:$0xff]
    %v2011 = vld [vmem:[#allocation9 + $0x18] sm:$0xff]
    %v2012 = vld [vmem:[#allocation9 + $0x20] sm:$0xff]
    %v2013 = vld [vmem:[#allocation9 + $0x28] sm:$0xff]
    %v2014 = vld [vmem:[#allocation9 + $0x30] sm:$0xff]
    %v2015 = vld [vmem:[#allocation9 + $0x38] sm:$0xff]
    %v2016 = vld [vmem:[#allocation9 + $0x40] sm:$0xff]
    %v2017 = vld [vmem:[#allocation9 + $0x48] sm:$0xff]
    %v2018 = vld [vmem:[#allocation9 + $0x50] sm:$0xff]
    %v2019 = vld [vmem:[#allocation9 + $0x58] sm:$0xff]
    %v2020 = vld [vmem:[#allocation9 + $0x60] sm:$0xff]
    %v2021 = vld [vmem:[#allocation9 + $0x68] sm:$0xff]
    %v2022 = vld [vmem:[#allocation9 + $0x70] sm:$0xff]
    %v2023 = vld [vmem:[#allocation9 + $0x78] sm:$0xff]
    %v2024 = vld [vmem:[#allocation9 + $0x80] sm:$0xff]
    %v2025 = vld [vmem:[#allocation9 + $0x88] sm:$0xff]
    %v2026 = vld [vmem:[#allocation9 + $0x90] sm:$0xff]
    %v2027 = vld [vmem:[#allocation9 + $0x98] sm:$0xff]
    %v2028 = vld [vmem:[#allocation9 + $0xa0] sm:$0xff]
    %v2029 = vld [vmem:[#allocation9 + $0xa8] sm:$0xff]
    %v2030 = vld [vmem:[#allocation9 + $0xb0] sm:$0xff]
    %v2031 = vld [vmem:[#allocation9 + $0xb8] sm:$0xff]
    %v2032 = vld [vmem:[#allocation9 + $0xc0] sm:$0xff]
    %v2033 = vld [vmem:[#allocation9 + $0xc8] sm:$0xff]
    %v2034 = vld [vmem:[#allocation9 + $0xd0] sm:$0xff]
    %v2035 = vld [vmem:[#allocation9 + $0xd8] sm:$0xff]
    %v2036 = vld [vmem:[#allocation9 + $0xe0] sm:$0xff]
    %v2037 = vld [vmem:[#allocation9 + $0xe8] sm:$0xff]
    %v2038 = vld [vmem:[#allocation9 + $0xf0] sm:$0xff]
    %v2039 = vld [vmem:[#allocation9 + $0xf8] sm:$0xff]
    %v2040 = vld [vmem:[#allocation9 + $0x100] sm:$0xff]
    %v2041 = vld [vmem:[#allocation9 + $0x108] sm:$0xff]
    %v2042 = vld [vmem:[#allocation9 + $0x110] sm:$0xff]
    %v2043 = vld [vmem:[#allocation9 + $0x118] sm:$0xff]
    %v2044 = vld [vmem:[#allocation9 + $0x120] sm:$0xff]
    %v2045 = vld [vmem:[#allocation9 + $0x128] sm:$0xff]
    %v2046 = vld [vmem:[#allocation9 + $0x130] sm:$0xff]
    %v2047 = vld [vmem:[#allocation9 + $0x138] sm:$0xff]
    %v2048 = vld [vmem:[#allocation9 + $0x140] sm:$0xff]
    %v2049 = vld [vmem:[#allocation9 + $0x148] sm:$0xff]
    %v2050 = vld [vmem:[#allocation9 + $0x150] sm:$0xff]
    %v2051 = vld [vmem:[#allocation9 + $0x158] sm:$0xff]
    %v2052 = vld [vmem:[#allocation9 + $0x160] sm:$0xff]
    %v2053 = vld [vmem:[#allocation9 + $0x168] sm:$0xff]
    %v2054 = vld [vmem:[#allocation9 + $0x170] sm:$0xff]
    %v2055 = vld [vmem:[#allocation9 + $0x178] sm:$0xff]
    %v2056 = vld [vmem:[%s5] sm:$0x7]
    %v2058 = vlaneseq
    %v2059 = vshrl.u32 %v2058, 7
    %v2060 = vsub.s32 0, %v2059
    %v2061 = vrot.slane %v2056, %v2060
    %v2062 = vlaneseq
    %v2063 = vshrl.u32 %v2062, 7
    %v2064 = vsub.s32 1, %v2063
    %v2065 = vrot.slane %v2056, %v2064
    %v2066 = vlaneseq
    %v2067 = vshrl.u32 %v2066, 7
    %v2068 = vsub.s32 2, %v2067
    %v2069 = vrot.slane %v2056, %v2068
    %2073 = vmatprep.subr.mxu0 %v2009
    %2074 = vmatpush1.msra.mxu0 %v2008
    %2075 = vmatprep.subr.mxu0 %v2012
    %2076 = vmatpush1.msra.mxu0 %v2011
    %2077 = vmatprep.subr.mxu0 %v2015
    %2078 = vmatpush1.msra.mxu0 %v2014
    %2079 = vmatprep.subr.mxu0 %v2018
    %2080 = vmatpush1.msra.mxu0 %v2017
    %2081 = vmatprep.subr.mxu0 %v2021
    %2082 = vmatpush1.msra.mxu0 %v2020
    %2083 = vmatprep.subr.mxu0 %v2024
    %2084 = vmatpush1.msra.mxu0 %v2023
    %2085 = vmatprep.subr.mxu0 %v2027
    %2086 = vmatpush1.msra.mxu0 %v2026
    %2087 = vmatprep.subr.mxu0 %v2030
    %2088 = vmatpush1.msra.mxu0 %v2029
    %2089 = vmatprep.subr.mxu0 %v2033
    %2090 = vmatpush1.msra.mxu0 %v2032
    %2091 = vmatprep.subr.mxu0 %v2036
    %2092 = vmatpush1.msra.mxu0 %v2035
    %2093 = vmatprep.subr.mxu0 %v2039
    %2094 = vmatpush1.msra.mxu0 %v2038
    %2095 = vmatprep.subr.mxu0 %v2042
    %2096 = vmatpush1.msra.mxu0 %v2041
    %2097 = vmatprep.subr.mxu0 %v2045
    %2098 = vmatpush1.msra.mxu0 %v2044
    %2099 = vmatprep.subr.mxu0 %v2048
    %2100 = vmatpush1.msra.mxu0 %v2047
    %2101 = vmatprep.subr.mxu0 %v2051
    %2102 = vmatpush1.msra.mxu0 %v2050
    %2103 = vmatprep.subr.mxu0 %v2054
    %2104 = vmatpush1.msra.mxu0 %v2053
    %2105 = vmatprep.subr.mxu0 0.0
    %2106 = vmatpush1.msra.mxu0 0.0
    %2107 = vmatprep.subr.mxu0 0.0
    %2108 = vmatpush1.msra.mxu0 0.0
    %2109 = vmatprep.subr.mxu0 0.0
    %2110 = vmatpush1.msra.mxu0 0.0
    %2111 = vmatprep.subr.mxu0 0.0
    %2112 = vmatpush1.msra.mxu0 0.0
    %2113 = vmatprep.subr.mxu0 0.0
    %2114 = vmatpush1.msra.mxu0 0.0
    %2115 = vmatprep.subr.mxu0 0.0
    %2116 = vmatpush1.msra.mxu0 0.0
    %2117 = vmatprep.subr.mxu0 0.0
    %2118 = vmatpush1.msra.mxu0 0.0
    %2119 = vmatprep.subr.mxu0 0.0
    %2120 = vmatpush1.msra.mxu0 0.0
    %2121 = vmatprep.subr.mxu0 0.0
    %2122 = vmatpush1.msra.mxu0 0.0
    %2123 = vmatprep.subr.mxu0 0.0
    %2124 = vmatpush1.msra.mxu0 0.0
    %2125 = vmatprep.subr.mxu0 0.0
    %2126 = vmatpush1.msra.mxu0 0.0
    %2127 = vmatprep.subr.mxu0 0.0
    %2128 = vmatpush1.msra.mxu0 0.0
    %2129 = vmatprep.subr.mxu0 0.0
    %2130 = vmatpush1.msra.mxu0 0.0
    %2131 = vmatprep.subr.mxu0 0.0
    %2132 = vmatpush1.msra.mxu0 0.0
    %2133 = vmatprep.subr.mxu0 0.0
    %2134 = vmatpush1.msra.mxu0 0.0
    %2135 = vmatprep.subr.mxu0 0.0
    %2136 = vmatpush1.msra.mxu0 0.0
    %2137 = vmatprep.mubr.f32.mxu0 0.0
    %2138 = vmatmul.mubr.f32.gmra.mrb[0].mxu0 %v2006
    %v2139 = vpop.f32.mrb[0].mxu0
    %v2140 = vadd.f32 %v2061, %v2139
    %v2141 = vpop.f32.mrb[0].mxu0
    %v2142 = vadd.f32 %v2065, %v2141
    %2143 = vdwg.mxu0
    %2144 = vmatprep.subr.mxu0 0.0
    %2145 = vmatpush1.msra.mxu0 %v2010
    %2146 = vmatprep.subr.mxu0 0.0
    %2147 = vmatpush1.msra.mxu0 %v2013
    %2148 = vmatprep.subr.mxu0 0.0
    %2149 = vmatpush1.msra.mxu0 %v2016
    %2150 = vmatprep.subr.mxu0 0.0
    %2151 = vmatpush1.msra.mxu0 %v2019
    %2152 = vmatprep.subr.mxu0 0.0
    %2153 = vmatpush1.msra.mxu0 %v2022
    %2154 = vmatprep.subr.mxu0 0.0
    %2155 = vmatpush1.msra.mxu0 %v2025
    %2156 = vmatprep.subr.mxu0 0.0
    %2157 = vmatpush1.msra.mxu0 %v2028
    %2158 = vmatprep.subr.mxu0 0.0
    %2159 = vmatpush1.msra.mxu0 %v2031
    %2160 = vmatprep.subr.mxu0 0.0
    %2161 = vmatpush1.msra.mxu0 %v2034
    %2162 = vmatprep.subr.mxu0 0.0
    %2163 = vmatpush1.msra.mxu0 %v2037
    %2164 = vmatprep.subr.mxu0 0.0
    %2165 = vmatpush1.msra.mxu0 %v2040
    %2166 = vmatprep.subr.mxu0 0.0
    %2167 = vmatpush1.msra.mxu0 %v2043
    %2168 = vmatprep.subr.mxu0 0.0
    %2169 = vmatpush1.msra.mxu0 %v2046
    %2170 = vmatprep.subr.mxu0 0.0
    %2171 = vmatpush1.msra.mxu0 %v2049
    %2172 = vmatprep.subr.mxu0 0.0
    %2173 = vmatpush1.msra.mxu0 %v2052
    %2174 = vmatprep.subr.mxu0 0.0
    %2175 = vmatpush1.msra.mxu0 %v2055
    %2176 = vmatprep.subr.mxu0 0.0
    %2177 = vmatpush1.msra.mxu0 0.0
    %2178 = vmatprep.subr.mxu0 0.0
    %2179 = vmatpush1.msra.mxu0 0.0
    %2180 = vmatprep.subr.mxu0 0.0
    %2181 = vmatpush1.msra.mxu0 0.0
    %2182 = vmatprep.subr.mxu0 0.0
    %2183 = vmatpush1.msra.mxu0 0.0
    %2184 = vmatprep.subr.mxu0 0.0
    %2185 = vmatpush1.msra.mxu0 0.0
    %2186 = vmatprep.subr.mxu0 0.0
    %2187 = vmatpush1.msra.mxu0 0.0
    %2188 = vmatprep.subr.mxu0 0.0
    %2189 = vmatpush1.msra.mxu0 0.0
    %2190 = vmatprep.subr.mxu0 0.0
    %2191 = vmatpush1.msra.mxu0 0.0
    %2192 = vmatprep.subr.mxu0 0.0
    %2193 = vmatpush1.msra.mxu0 0.0
    %2194 = vmatprep.subr.mxu0 0.0
    %2195 = vmatpush1.msra.mxu0 0.0
    %2196 = vmatprep.subr.mxu0 0.0
    %2197 = vmatpush1.msra.mxu0 0.0
    %2198 = vmatprep.subr.mxu0 0.0
    %2199 = vmatpush1.msra.mxu0 0.0
    %2200 = vmatprep.subr.mxu0 0.0
    %2201 = vmatpush1.msra.mxu0 0.0
    %2202 = vmatprep.subr.mxu0 0.0
    %2203 = vmatpush1.msra.mxu0 0.0
    %2204 = vmatprep.subr.mxu0 0.0
    %2205 = vmatpush1.msra.mxu0 0.0
    %2206 = vmatprep.subr.mxu0 0.0
    %2207 = vmatpush1.msra.mxu0 0.0
    %2208 = vmatprep.mubr.f32.mxu0 0.0
    %2209 = vmatmul.mubr.f32.gmra.mrb[0].mxu0 %v2006
    %v2210 = vpop.f32.mrb[0].mxu0
    %v2211 = vadd.f32 %v2069, %v2210
    %v2212 = vpop.f32.mrb[0].mxu0
    %2213 = vdwg.mxu0
    %s2214 = scalar_lea.vmem [#allocation3], 7
    %v2215 = vld [vmem:[%s2214] ss:$8 sm:$0x7]
    %v2218 = vcombine.low %v2140, %v2142
    %v2220 = vunpack.c.l.s4 1966171168
    %v2221 = vunpack.c.0.s8 %v2220
    %v2222 = vlaneseq
    %v2223 = vshrl.u32 %v2222, 7
    %v2224 = vsub.s32 %v2221, %v2223
    %v2225 = vrot.slane %v2218, %v2224
    %v2227 = vunpack.c.l.s4 1966171168
    %v2228 = vunpack.c.0.s8 %v2227
    %v2229 = vlaneseq
    %v2230 = vshrl.u32 %v2229, 7
    %v2231 = vsub.s32 %v2228, %v2230
    %v2232 = vrot.slane %v2225, %v2231
    %v2234 = vadd.f32 %v2215, %v2232
    %v2235 = vxor.u32 %v2234, 2147483648
    %v2236 = vmul.f32 %v2235, 1.442695
    %v2237 = vpow.pop %v2236
    %v2238 = vadd.f32 %v2237, 1.0
    %v2239 = vrcp.pop %v2238
    %v2240 = vmul.f32 1.0, %v2239
    %v2241 = vmul.f32 %v2240, %v2211
    %v2243 = vrot.slane %v2215, 2
    %v2245 = vadd.f32 %v2243, %v2241
    %v2246 = vtanh.pop %v2245
    %v2248 = vrot.slane %v2240, 1
    %v2250 = vsub.f32 1.0, %v2248
    %v2251 = vmul.f32 %v2250, %v2246
    %v2252 = vmul.f32 %v2248, %v2006
    %v2253 = vadd.f32 %v2251, %v2252
    %2254 = vst [vmem:[#allocation10 + $0x7] sm:$0x1] %v2253
    %2255 = vst [vmem:[#allocation2] sm:$0x1] %v2253
    // Predicated region
    $region42: #{tpu_custom_call.1} parent=1 // pred_check
      _
    $region43: #{tpu_custom_call.1} parent=1 // pred_check_branch
      %2257 = sbr.rel (0) target = $region45
    $region44: #{tpu_custom_call.1} parent=1 // pred_region
      %s2259 = ssub.s32 128, 128
      %2260 = vsyncadd [#allocation6], %s2259
      %s2262 = sshll.u32 [#allocation10], 4
      %s2263 = int_to_ptr.vmem [resolvable:$true] %s2262
      %2265 = dma.vmem_to_hbm [thread:$0]  %s2263, 128, %s6, [#allocation6]
    $region45: #{tpu_custom_call.1} parent=1 // pred_fallthru
      _
    // Predicated region
    $region46: #{tpu_custom_call.1} parent=1 // pred_check
      _
    $region47: #{tpu_custom_call.1} parent=1 // pred_check_branch
      %2267 = sbr.rel (0) target = $region49
    $region48: #{tpu_custom_call.1} parent=1 // pred_region
      %2268 = dma.done [#allocation6], 128
    $region49: #{tpu_custom_call.1} parent=1 // pred_fallthru
      _
    %2269 = vsyncpa [#allocation5], 1
    %2270 = vsyncpa [#allocation8], 1
    %2271 = vsyncpa [#allocation6], 1

</llo_original>
